<compile_context>
chip_gen: v7x
topology: tpu7x:2x2x1
jax: 0.10.0
libtpu: 0.0.40
codegen_flags: <defaults>
</compile_context>

<pallas_src>
import math
import functools

import jax
import jax.numpy as jnp
from jax import lax
from jax.experimental import pallas as pl
from jax.experimental.pallas import tpu as pltpu


def _encoder_layer_kernel(
    x_ref,
    wq_ref, bq_ref, wk_ref, bk_ref, wv_ref, bv_ref, wo_ref, bo_ref,
    w1_ref, b1_ref, w2_ref, b2_ref,
    g1_ref, be1_ref, g2_ref, be2_ref,
    o_ref,
    k_sc, v_sc,
    *, num_heads, d_k, eps, compute_dtype, exp_dtype, approx_recip,
    q_tile, k_tile, n_k,
):
    f32 = jnp.float32
    H = num_heads
    S = x_ref.shape[0]
    tq = q_tile
    tk = k_tile

    qi = pl.program_id(1)

    # ---- K/V projection: once per batch (qi == 0), cached head-major in VMEM ----
    @pl.when(qi == 0)
    def _():
        xs_c = x_ref[...].astype(compute_dtype)
        k = jnp.dot(xs_c, wk_ref[...], preferred_element_type=f32) + bk_ref[...]
        v = jnp.dot(xs_c, wv_ref[...], preferred_element_type=f32) + bv_ref[...]
        # One (S, D) relayout per batch (instead of per query tile).
        k_sc[...] = jnp.transpose(k.reshape(S, H, d_k), (1, 0, 2)).astype(compute_dtype)
        v_sc[...] = jnp.transpose(v.reshape(S, H, d_k), (1, 0, 2)).astype(compute_dtype)

    # ---- query tile (also the residual source), sliced from the resident block ----
    q_start = pl.multiple_of(qi * tq, tq)
    xq = x_ref[pl.ds(q_start, tq), :]                       # (tq, D) f32
    xq_c = xq.astype(compute_dtype)

    q = jnp.dot(xq_c, wq_ref[...], preferred_element_type=f32) + bq_ref[...]
    # Fold the attention scale into q: a (tq, D) multiply instead of (H, tq, S).
    q = q * (1.0 / math.sqrt(d_k))
    q3 = jnp.transpose(q.reshape(tq, H, d_k), (1, 0, 2)).astype(compute_dtype)

    # ---- flash-style online softmax over key tiles (bounds score temporaries) ----
    def kv_step(kt, carry):
        m, l, acc = carry
        ks = pl.multiple_of(kt * tk, tk)
        k_t = k_sc[:, pl.ds(ks, tk), :]                     # (H, tk, d_k)
        v_t = v_sc[:, pl.ds(ks, tk), :]                     # (H, tk, d_k)
        s = jnp.einsum("hqd,hkd->hqk", q3, k_t,
                       preferred_element_type=f32)          # (H, tq, tk) f32
        m_new = jnp.maximum(m, jnp.max(s, axis=-1, keepdims=True))
        alpha = jnp.exp(m - m_new)                          # f32, (H, tq, 1)
        p = jnp.exp((s - m_new).astype(exp_dtype))          # big exp in exp_dtype
        l_new = alpha * l + jnp.sum(p, axis=-1, keepdims=True, dtype=f32)
        acc_new = alpha * acc + jnp.einsum(
            "hqk,hkd->hqd", p.astype(compute_dtype), v_t,
            preferred_element_type=f32)                     # (H, tq, d_k) f32
        return m_new, l_new, acc_new

    m0 = jnp.full((H, tq, 1), -jnp.inf, f32)
    l0 = jnp.zeros((H, tq, 1), f32)
    a0 = jnp.zeros((H, tq, d_k), f32)
    m, l, acc = lax.fori_loop(0, n_k, kv_step, (m0, l0, a0),
                              unroll=(n_k <= 4))

    # Normalize AFTER the PV matmul: (H, tq, d_k) multiply instead of (H, tq, S);
    # reciprocal stays on the EUP slot.
    ctx = acc * pl.reciprocal(l, approx=approx_recip)       # (H, tq, d_k)
    attn_ctx = jnp.transpose(ctx, (1, 0, 2)).reshape(tq, H * d_k)

    # ---- output projection + residual + LayerNorm1 (f32 statistics) ----
    attn_out = jnp.dot(attn_ctx.astype(compute_dtype), wo_ref[...],
                       preferred_element_type=f32) + bo_ref[...]
    y = xq + attn_out
    mu = jnp.mean(y, axis=-1, keepdims=True)
    var = jnp.mean((y - mu) * (y - mu), axis=-1, keepdims=True)
    y = (y - mu) * lax.rsqrt(var + eps) * g1_ref[...] + be1_ref[...]

    # ---- feed-forward: Linear -> ReLU -> Linear, residual, LayerNorm2 ----
    h1 = jnp.dot(y.astype(compute_dtype), w1_ref[...],
                 preferred_element_type=f32) + b1_ref[...]
    h1 = jnp.maximum(h1, 0.0)
    ff = jnp.dot(h1.astype(compute_dtype), w2_ref[...],
                 preferred_element_type=f32) + b2_ref[...]

    z = y + ff
    mu2 = jnp.mean(z, axis=-1, keepdims=True)
    var2 = jnp.mean((z - mu2) * (z - mu2), axis=-1, keepdims=True)
    o_ref[...] = ((z - mu2) * lax.rsqrt(var2 + eps) * g2_ref[...]
                  + be2_ref[...]).astype(o_ref.dtype)


def encoder_layer_pallas(
    x, params, *, num_heads, eps=1e-5,
    compute_dtype=jnp.bfloat16, exp_dtype=None,
    q_tile=128, k_tile=256,
):
    """x: (B, S, D) float32. params: dict of pre-transposed weights (in, out).

    q_tile: 128 matches v5e's 4x128^2 MXU; use 256 on v6e (and on v7x only if
    VMEM allows).  exp_dtype defaults to compute_dtype; pass jnp.float32 on v5e.
    """
    B, S, D = x.shape
    d_k = D // num_heads

    tq = min(q_tile, S)
    assert S % tq == 0, "S must be divisible by the query tile size"
    n_q = S // tq
    tk = min(k_tile, S)
    assert S % tk == 0, "S must be divisible by the key tile size"
    n_k = S // tk

    if exp_dtype is None:
        exp_dtype = compute_dtype

    # Matmul weights in compute_dtype (bf16 halves DMA + VMEM); biases and
    # LayerNorm params stay f32 (applied to f32 accumulators).
    cast = lambda w: w.astype(compute_dtype)
    plist = [
        cast(params["wq"]), params["bq"], cast(params["wk"]), params["bk"],
        cast(params["wv"]), params["bv"], cast(params["wo"]), params["bo"],
        cast(params["w1"]), params["b1"], cast(params["w2"]), params["b2"],
        params["g1"], params["be1"], params["g2"], params["be2"],
    ]

    def resident(shape):
        nd = len(shape)
        # Full-array block, constant block index: fetched once, stays resident.
        # TODO(synk): pipeline_mode=pl.Buffered(1) here once verified via
        # pl.lower_as_mlir (halves resident-weight VMEM on v7x).
        def idx(b, qi):
            return (0,) * nd
        return pl.BlockSpec(shape, idx)

    in_specs = [
        # Full sequence per batch: source of K/V (at qi==0) and of the query tile.
        pl.BlockSpec((pl.Squeezed(), S, D), lambda b, qi: (b, 0, 0)),
    ] + [resident(p.shape) for p in plist]

    out_specs = pl.BlockSpec((pl.Squeezed(), tq, D), lambda b, qi: (b, qi, 0))

    # Size the scoped VMEM limit from the hardware (≈48 MiB on v7x, ≈96 MiB on
    # v5e/v6e) instead of hard-coding 32 MiB.
    try:
        vmem_cap = pltpu.get_tpu_info().vmem_capacity_bytes
    except Exception:
        vmem_cap = 64 * 1024 * 1024
    vmem_limit = min(int(vmem_cap * 3 // 4), 100 * 1024 * 1024)

    d_ff = params["w1"].shape[1]
    flops = int(B * (8 * S * D * D + 4 * S * S * D + 4 * S * D * d_ff))
    transcendentals = int(B * num_heads * S * S)
    bytes_accessed = int(
        2 * B * S * D * 4
        + sum(int(p.size) * p.dtype.itemsize for p in plist)
    )

    kernel = functools.partial(
        _encoder_layer_kernel,
        num_heads=num_heads, d_k=d_k, eps=eps,
        compute_dtype=compute_dtype, exp_dtype=exp_dtype,
        approx_recip=(compute_dtype != jnp.float32),
        q_tile=tq, k_tile=tk, n_k=n_k,
    )

    return pl.pallas_call(
        kernel,
        out_shape=jax.ShapeDtypeStruct((B, S, D), jnp.float32),
        grid_spec=pltpu.PrefetchScalarGridSpec(
            num_scalar_prefetch=0,
            grid=(B, n_q),
            in_specs=in_specs,
            out_specs=out_specs,
            scratch_shapes=[
                pltpu.VMEM((num_heads, S, d_k), compute_dtype),  # K cache
                pltpu.VMEM((num_heads, S, d_k), compute_dtype),  # V cache
            ],
        ),
        compiler_params=pltpu.CompilerParams(
            # qi must be "arbitrary": the K/V scratch carries across qi steps.
            dimension_semantics=("parallel", "arbitrary"),
            vmem_limit_bytes=vmem_limit,
        ),
        cost_estimate=pl.CostEstimate(
            flops=flops,
            transcendentals=transcendentals,
            bytes_accessed=bytes_accessed,
        ),
    )(x, *plist)


def encoder_layer_ref(x, params, *, num_heads, eps=1e-5):
    """Pure-JAX reference mirroring the PyTorch forward (dropout = identity)."""
    B, S, D = x.shape
    d_k = D // num_heads

    def linear(a, w, b):
        return a @ w + b

    q = linear(x, params["wq"], params["bq"])
    k = linear(x, params["wk"], params["bk"])
    v = linear(x, params["wv"], params["bv"])
    q = q.reshape(B, S, num_heads, d_k).transpose(0, 2, 1, 3)
    k = k.reshape(B, S, num_heads, d_k).transpose(0, 2, 1, 3)
    v = v.reshape(B, S, num_heads, d_k).transpose(0, 2, 1, 3)
    scores = jnp.einsum("bhqd,bhkd->bhqk", q, k) / math.sqrt(d_k)
    attn = jax.nn.softmax(scores, axis=-1)
    out = jnp.einsum("bhqk,bhkd->bhqd", attn, v)
    out = out.transpose(0, 2, 1, 3).reshape(B, S, D)
    attn_out = linear(out, params["wo"], params["bo"])

    y = x + attn_out
    mu = y.mean(-1, keepdims=True)
    var = ((y - mu) ** 2).mean(-1, keepdims=True)
    y = (y - mu) * jax.lax.rsqrt(var + eps) * params["g1"] + params["be1"]

    h1 = jax.nn.relu(linear(y, params["w1"], params["b1"]))
    ff = linear(h1, params["w2"], params["b2"])
    z = y + ff
    mu2 = z.mean(-1, keepdims=True)
    var2 = ((z - mu2) ** 2).mean(-1, keepdims=True)
    return (z - mu2) * jax.lax.rsqrt(var2 + eps) * params["g2"] + params["be2"]


def make_params(key, d_model, d_ff):
    """Deterministic parameter init. Linear weights stored pre-transposed (in, out)."""
    ks = jax.random.split(key, 8)

    def lin(k, fan_in, fan_out):
        bound = 1.0 / math.sqrt(fan_in)
        kw, kb = jax.random.split(k)
        w = jax.random.uniform(kw, (fan_in, fan_out), jnp.float32, -bound, bound)
        b = jax.random.uniform(kb, (1, fan_out), jnp.float32, -bound, bound)
        return w, b

    wq, bq = lin(ks[0], d_model, d_model)
    wk, bk = lin(ks[1], d_model, d_model)
    wv, bv = lin(ks[2], d_model, d_model)
    wo, bo = lin(ks[3], d_model, d_model)
    w1, b1 = lin(ks[4], d_model, d_ff)
    w2, b2 = lin(ks[5], d_ff, d_model)
    g1 = jnp.ones((1, d_model), jnp.float32)
    be1 = jnp.zeros((1, d_model), jnp.float32)
    g2 = jnp.ones((1, d_model), jnp.float32)
    be2 = jnp.zeros((1, d_model), jnp.float32)
    return dict(
        wq=wq, bq=bq, wk=wk, bk=bk, wv=wv, bv=bv, wo=wo, bo=bo,
        w1=w1, b1=b1, w2=w2, b2=b2, g1=g1, be1=be1, g2=g2, be2=be2,
    )


if __name__ == "__main__":
    def run_case(B, S, d_model, num_heads, d_ff, f32_tol, name, **kw):
        key = jax.random.PRNGKey(0)
        kx, kp = jax.random.split(key)
        x = jax.random.normal(kx, (B, S, d_model), jnp.float32)
        params = make_params(kp, d_model, d_ff)

        with jax.default_matmul_precision("highest"):
            ref = encoder_layer_ref(x, params, num_heads=num_heads)
        ref = jax.block_until_ready(ref)

        # Full-precision compute path: tight correctness check.
        out_f32 = encoder_layer_pallas(
            x, params, num_heads=num_heads, compute_dtype=jnp.float32, **kw)
        out_f32 = jax.block_until_ready(out_f32)
        assert out_f32.shape == (B, S, d_model)
        err = jnp.max(jnp.abs(out_f32 - ref))
        assert jnp.allclose(out_f32, ref, atol=f32_tol, rtol=f32_tol), (
            f"{name}: f32 max abs err {err}")

        # bf16 MXU path (production default): bf16 exp + approx reciprocal ->
        # looser tolerance (document for quality-sensitive inference).
        out_bf16 = encoder_layer_pallas(
            x, params, num_heads=num_heads, compute_dtype=jnp.bfloat16, **kw)
        out_bf16 = jax.block_until_ready(out_bf16)
        err_b = jnp.max(jnp.abs(out_bf16 - ref))
        assert jnp.allclose(out_bf16, ref, atol=5e-2, rtol=5e-2), (
            f"{name}: bf16 max abs err {err_b}")

    # Small shapes consistent with the module (single query/key tile).
    run_case(2, 8, 32, 4, 64, 1e-4, "small")
    # Multi query-tile + multi key-tile path: exercises the K/V cache reuse
    # across qi steps and the flash-style online-softmax key loop.
    run_case(2, 256, 32, 4, 64, 1e-3, "tiled", q_tile=128, k_tile=128)

    print("KERNEL_OK")
</pallas_src>

<mosaic_0001>
module attributes {stable_mosaic.version = 11 : i64} {
  func.func @_encoder_layer_kernel(%arg0: i32, %arg1: i32, %arg2: memref<1x8x32xf32, #tpu.memory_space<vmem>>, %arg3: memref<32x32xf32, #tpu.memory_space<vmem>>, %arg4: memref<1x32xf32, #tpu.memory_space<vmem>>, %arg5: memref<32x32xf32, #tpu.memory_space<vmem>>, %arg6: memref<1x32xf32, #tpu.memory_space<vmem>>, %arg7: memref<32x32xf32, #tpu.memory_space<vmem>>, %arg8: memref<1x32xf32, #tpu.memory_space<vmem>>, %arg9: memref<32x32xf32, #tpu.memory_space<vmem>>, %arg10: memref<1x32xf32, #tpu.memory_space<vmem>>, %arg11: memref<32x64xf32, #tpu.memory_space<vmem>>, %arg12: memref<1x64xf32, #tpu.memory_space<vmem>>, %arg13: memref<64x32xf32, #tpu.memory_space<vmem>>, %arg14: memref<1x32xf32, #tpu.memory_space<vmem>>, %arg15: memref<1x32xf32, #tpu.memory_space<vmem>>, %arg16: memref<1x32xf32, #tpu.memory_space<vmem>>, %arg17: memref<1x32xf32, #tpu.memory_space<vmem>>, %arg18: memref<1x32xf32, #tpu.memory_space<vmem>>, %arg19: memref<1x8x32xf32, #tpu.memory_space<vmem>>, %arg20: memref<4x8x8xf32, #tpu.memory_space<vmem>>, %arg21: memref<4x8x8xf32, #tpu.memory_space<vmem>>) attributes {dimension_semantics = [#tpu.dimension_semantics<parallel>, #tpu.dimension_semantics<arbitrary>], iteration_bounds = array<i64: 2, 1>, scalar_prefetch = 0 : i64, scratch_operands = 2 : i64, tpu.core_type = #tpu.core_type<tc>, window_params = [{transform_indices = @transform_0, window_bounds = array<i64: 1, 8, 32>}, {pipeline_mode = #tpu.pipeline_mode<synchronous>, transform_indices = @transform_1, window_bounds = array<i64: 32, 32>}, {pipeline_mode = #tpu.pipeline_mode<synchronous>, transform_indices = @transform_2, window_bounds = array<i64: 1, 32>}, {pipeline_mode = #tpu.pipeline_mode<synchronous>, transform_indices = @transform_3, window_bounds = array<i64: 32, 32>}, {pipeline_mode = #tpu.pipeline_mode<synchronous>, transform_indices = @transform_4, window_bounds = array<i64: 1, 32>}, {pipeline_mode = #tpu.pipeline_mode<synchronous>, transform_indices = @transform_5, window_bounds = array<i64: 32, 32>}, {pipeline_mode = #tpu.pipeline_mode<synchronous>, transform_indices = @transform_6, window_bounds = array<i64: 1, 32>}, {pipeline_mode = #tpu.pipeline_mode<synchronous>, transform_indices = @transform_7, window_bounds = array<i64: 32, 32>}, {pipeline_mode = #tpu.pipeline_mode<synchronous>, transform_indices = @transform_8, window_bounds = array<i64: 1, 32>}, {pipeline_mode = #tpu.pipeline_mode<synchronous>, transform_indices = @transform_9, window_bounds = array<i64: 32, 64>}, {pipeline_mode = #tpu.pipeline_mode<synchronous>, transform_indices = @transform_10, window_bounds = array<i64: 1, 64>}, {pipeline_mode = #tpu.pipeline_mode<synchronous>, transform_indices = @transform_11, window_bounds = array<i64: 64, 32>}, {pipeline_mode = #tpu.pipeline_mode<synchronous>, transform_indices = @transform_12, window_bounds = array<i64: 1, 32>}, {pipeline_mode = #tpu.pipeline_mode<synchronous>, transform_indices = @transform_13, window_bounds = array<i64: 1, 32>}, {pipeline_mode = #tpu.pipeline_mode<synchronous>, transform_indices = @transform_14, window_bounds = array<i64: 1, 32>}, {pipeline_mode = #tpu.pipeline_mode<synchronous>, transform_indices = @transform_15, window_bounds = array<i64: 1, 32>}, {pipeline_mode = #tpu.pipeline_mode<synchronous>, transform_indices = @transform_16, window_bounds = array<i64: 1, 32>}, {transform_indices = @transform_17, window_bounds = array<i64: 1, 8, 32>}]} {
    %c0_i32 = arith.constant 0 : i32
    %0 = arith.cmpi eq, %arg1, %c0_i32 : i32
    %1 = arith.extui %0 : i1 to i32
    %c0_i32_0 = arith.constant 0 : i32
    %2 = arith.cmpi ne, %1, %c0_i32_0 : i32
    scf.if %2 {
      %c0_57 = arith.constant 0 : index
      %c0_58 = arith.constant 0 : index
      %c0_59 = arith.constant 0 : index
      %122 = vector.load %arg2[%c0_57, %c0_58, %c0_59] : memref<1x8x32xf32, #tpu.memory_space<vmem>>, vector<1x8x32xf32>
      %123 = vector.shape_cast %122 : vector<1x8x32xf32> to vector<8x32xf32>
      %c0_60 = arith.constant 0 : index
      %c0_61 = arith.constant 0 : index
      %124 = vector.load %arg5[%c0_60, %c0_61] : memref<32x32xf32, #tpu.memory_space<vmem>>, vector<32x32xf32>
      %cst_62 = arith.constant dense<0.000000e+00> : vector<8x32xf32>
      %125 = tpu.matmul %123, %124, %cst_62 {dimension_numbers = #tpu.dot_dimension_numbers<[1], [0], [0], [1], [0, 0, 1, 1], [], []>} : vector<8x32xf32>, vector<32x32xf32>, vector<8x32xf32> -> vector<8x32xf32>
      %c0_63 = arith.constant 0 : index
      %c0_64 = arith.constant 0 : index
      %126 = vector.load %arg6[%c0_63, %c0_64] : memref<1x32xf32, #tpu.memory_space<vmem>>, vector<1x32xf32>
      %127 = vector.broadcast %126 : vector<1x32xf32> to vector<8x32xf32>
      %128 = arith.addf %125, %127 : vector<8x32xf32>
      %c0_65 = arith.constant 0 : index
      %c0_66 = arith.constant 0 : index
      %129 = vector.load %arg7[%c0_65, %c0_66] : memref<32x32xf32, #tpu.memory_space<vmem>>, vector<32x32xf32>
      %cst_67 = arith.constant dense<0.000000e+00> : vector<8x32xf32>
      %130 = tpu.matmul %123, %129, %cst_67 {dimension_numbers = #tpu.dot_dimension_numbers<[1], [0], [0], [1], [0, 0, 1, 1], [], []>} : vector<8x32xf32>, vector<32x32xf32>, vector<8x32xf32> -> vector<8x32xf32>
      %c0_68 = arith.constant 0 : index
      %c0_69 = arith.constant 0 : index
      %131 = vector.load %arg8[%c0_68, %c0_69] : memref<1x32xf32, #tpu.memory_space<vmem>>, vector<1x32xf32>
      %132 = vector.broadcast %131 : vector<1x32xf32> to vector<8x32xf32>
      %133 = arith.addf %130, %132 : vector<8x32xf32>
      %134 = vector.shape_cast %128 : vector<8x32xf32> to vector<8x4x8xf32>
      %135 = tpu.transpose %134, [1, 0, 2] : vector<8x4x8xf32> -> vector<4x8x8xf32>
      %c0_70 = arith.constant 0 : index
      %c0_71 = arith.constant 0 : index
      %c0_72 = arith.constant 0 : index
      %136 = vector.load %arg20[%c0_70, %c0_71, %c0_72] : memref<4x8x8xf32, #tpu.memory_space<vmem>>, vector<4x8x8xf32>
      tpu.vector_store %arg20[%c0_70, %c0_71, %c0_72], %135 {strides = array<i32>} : memref<4x8x8xf32, #tpu.memory_space<vmem>>, vector<4x8x8xf32>,
      %137 = vector.shape_cast %133 : vector<8x32xf32> to vector<8x4x8xf32>
      %138 = tpu.transpose %137, [1, 0, 2] : vector<8x4x8xf32> -> vector<4x8x8xf32>
      %c0_73 = arith.constant 0 : index
      %c0_74 = arith.constant 0 : index
      %c0_75 = arith.constant 0 : index
      %139 = vector.load %arg21[%c0_73, %c0_74, %c0_75] : memref<4x8x8xf32, #tpu.memory_space<vmem>>, vector<4x8x8xf32>
      tpu.vector_store %arg21[%c0_73, %c0_74, %c0_75], %138 {strides = array<i32>} : memref<4x8x8xf32, #tpu.memory_space<vmem>>, vector<4x8x8xf32>,
    } else {
    }
    %c8_i32 = arith.constant 8 : i32
    %3 = arith.muli %arg1, %c8_i32 : i32
    %4 = tpu.assume_multiple %3, 8 : i32
    %c0 = arith.constant 0 : index
    %5 = arith.index_cast %4 : i32 to index
    %c0_1 = arith.constant 0 : index
    %6 = vector.load %arg2[%c0, %5, %c0_1] : memref<1x8x32xf32, #tpu.memory_space<vmem>>, vector<1x8x32xf32>
    %7 = vector.shape_cast %6 : vector<1x8x32xf32> to vector<8x32xf32>
    %c0_2 = arith.constant 0 : index
    %c0_3 = arith.constant 0 : index
    %8 = vector.load %arg3[%c0_2, %c0_3] : memref<32x32xf32, #tpu.memory_space<vmem>>, vector<32x32xf32>
    %cst = arith.constant dense<0.000000e+00> : vector<8x32xf32>
    %9 = tpu.matmul %7, %8, %cst {dimension_numbers = #tpu.dot_dimension_numbers<[1], [0], [0], [1], [0, 0, 1, 1], [], []>} : vector<8x32xf32>, vector<32x32xf32>, vector<8x32xf32> -> vector<8x32xf32>
    %c0_4 = arith.constant 0 : index
    %c0_5 = arith.constant 0 : index
    %10 = vector.load %arg4[%c0_4, %c0_5] : memref<1x32xf32, #tpu.memory_space<vmem>>, vector<1x32xf32>
    %11 = vector.broadcast %10 : vector<1x32xf32> to vector<8x32xf32>
    %12 = arith.addf %9, %11 : vector<8x32xf32>
    %cst_6 = arith.constant 0.353553385 : f32
    %13 = vector.broadcast %cst_6 : f32 to vector<8x32xf32>
    %14 = arith.mulf %12, %13 : vector<8x32xf32>
    %15 = vector.shape_cast %14 : vector<8x32xf32> to vector<8x4x8xf32>
    %16 = tpu.transpose %15, [1, 0, 2] : vector<8x4x8xf32> -> vector<4x8x8xf32>
    %cst_7 = arith.constant 0xFF800000 : f32
    %17 = vector.broadcast %cst_7 : f32 to vector<4x8x1xf32>
    %cst_8 = arith.constant 0.000000e+00 : f32
    %18 = vector.broadcast %cst_8 : f32 to vector<4x8x1xf32>
    %cst_9 = arith.constant 0.000000e+00 : f32
    %19 = vector.broadcast %cst_9 : f32 to vector<4x8x8xf32>
    %c0_i32_10 = arith.constant 0 : i32
    %c8_i32_11 = arith.constant 8 : i32
    %20 = arith.muli %c0_i32_10, %c8_i32_11 : i32
    %21 = tpu.assume_multiple %20, 8 : i32
    %c0_12 = arith.constant 0 : index
    %22 = arith.index_cast %21 : i32 to index
    %c0_13 = arith.constant 0 : index
    %23 = vector.load %arg20[%c0_12, %22, %c0_13] : memref<4x8x8xf32, #tpu.memory_space<vmem>>, vector<4x8x8xf32>
    %c0_14 = arith.constant 0 : index
    %24 = arith.index_cast %21 : i32 to index
    %c0_15 = arith.constant 0 : index
    %25 = vector.load %arg21[%c0_14, %24, %c0_15] : memref<4x8x8xf32, #tpu.memory_space<vmem>>, vector<4x8x8xf32>
    "tpu.trace_start"() <{level = 10 : i32, message = "hqd,hkd->hqk"}> : () -> ()
    %cst_16 = arith.constant dense<0.000000e+00> : vector<4x8x8xf32>
    %26 = tpu.matmul %16, %23, %cst_16 {dimension_numbers = #tpu.dot_dimension_numbers<[2], [2], [1], [1], [0, 0, 0, 1, 1, 1], [0], [0]>} : vector<4x8x8xf32>, vector<4x8x8xf32>, vector<4x8x8xf32> -> vector<4x8x8xf32>
    "tpu.trace_stop"() : () -> ()
    %cst_17 = arith.constant dense<0xFF800000> : vector<4x8xf32>
    %27 = vector.multi_reduction <maximumf>, %26, %cst_17 [2] : vector<4x8x8xf32> to vector<4x8xf32>
    %28 = vector.shape_cast %27 : vector<4x8xf32> to vector<4x8x1xf32>
    %29 = arith.maximumf %17, %28 : vector<4x8x1xf32>
    %30 = arith.subf %17, %29 : vector<4x8x1xf32>
    %31 = math.exp %30 : vector<4x8x1xf32>
    %32 = vector.broadcast %29 : vector<4x8x1xf32> to vector<4x8x8xf32>
    %33 = arith.subf %26, %32 : vector<4x8x8xf32>
    %34 = math.exp %33 : vector<4x8x8xf32>
    %35 = arith.mulf %31, %18 : vector<4x8x1xf32>
    %cst_18 = arith.constant dense<0.000000e+00> : vector<4x8xf32>
    %36 = vector.multi_reduction <add>, %34, %cst_18 [2] : vector<4x8x8xf32> to vector<4x8xf32>
    %37 = vector.shape_cast %36 : vector<4x8xf32> to vector<4x8x1xf32>
    %38 = arith.addf %35, %37 : vector<4x8x1xf32>
    %39 = vector.broadcast %31 : vector<4x8x1xf32> to vector<4x8x8xf32>
    %40 = arith.mulf %39, %19 : vector<4x8x8xf32>
    "tpu.trace_start"() <{level = 10 : i32, message = "hqk,hkd->hqd"}> : () -> ()
    %cst_19 = arith.constant dense<0.000000e+00> : vector<4x8x8xf32>
    %41 = tpu.matmul %34, %25, %cst_19 {dimension_numbers = #tpu.dot_dimension_numbers<[2], [1], [1], [2], [0, 0, 0, 1, 1, 2], [0], [0]>} : vector<4x8x8xf32>, vector<4x8x8xf32>, vector<4x8x8xf32> -> vector<4x8x8xf32>
    "tpu.trace_stop"() : () -> ()
    %42 = arith.addf %40, %41 : vector<4x8x8xf32>
    %c1_i32 = arith.constant 1 : i32
    %43 = tpu.reciprocal %38 : vector<4x8x1xf32> -> vector<4x8x1xf32>
    %44 = vector.broadcast %43 : vector<4x8x1xf32> to vector<4x8x8xf32>
    %45 = arith.mulf %42, %44 : vector<4x8x8xf32>
    %46 = tpu.transpose %45, [1, 0, 2] : vector<4x8x8xf32> -> vector<8x4x8xf32>
    %47 = vector.shape_cast %46 : vector<8x4x8xf32> to vector<8x32xf32>
    %c0_20 = arith.constant 0 : index
    %c0_21 = arith.constant 0 : index
    %48 = vector.load %arg9[%c0_20, %c0_21] : memref<32x32xf32, #tpu.memory_space<vmem>>, vector<32x32xf32>
    %cst_22 = arith.constant dense<0.000000e+00> : vector<8x32xf32>
    %49 = tpu.matmul %47, %48, %cst_22 {dimension_numbers = #tpu.dot_dimension_numbers<[1], [0], [0], [1], [0, 0, 1, 1], [], []>} : vector<8x32xf32>, vector<32x32xf32>, vector<8x32xf32> -> vector<8x32xf32>
    %c0_23 = arith.constant 0 : index
    %c0_24 = arith.constant 0 : index
    %50 = vector.load %arg10[%c0_23, %c0_24] : memref<1x32xf32, #tpu.memory_space<vmem>>, vector<1x32xf32>
    %51 = vector.broadcast %50 : vector<1x32xf32> to vector<8x32xf32>
    %52 = arith.addf %49, %51 : vector<8x32xf32>
    %53 = arith.addf %7, %52 : vector<8x32xf32>
    %cst_25 = arith.constant dense<0.000000e+00> : vector<8xf32>
    %54 = vector.multi_reduction <add>, %53, %cst_25 [1] : vector<8x32xf32> to vector<8xf32>
    %55 = vector.shape_cast %54 : vector<8xf32> to vector<8x1xf32>
    %cst_26 = arith.constant 3.200000e+01 : f32
    %56 = vector.broadcast %cst_26 : f32 to vector<8x1xf32>
    %57 = arith.divf %55, %56 : vector<8x1xf32>
    %58 = vector.broadcast %57 : vector<8x1xf32> to vector<8x32xf32>
    %59 = arith.subf %53, %58 : vector<8x32xf32>
    %60 = vector.broadcast %57 : vector<8x1xf32> to vector<8x32xf32>
    %61 = arith.subf %53, %60 : vector<8x32xf32>
    %62 = arith.mulf %59, %61 : vector<8x32xf32>
    %cst_27 = arith.constant dense<0.000000e+00> : vector<8xf32>
    %63 = vector.multi_reduction <add>, %62, %cst_27 [1] : vector<8x32xf32> to vector<8xf32>
    %64 = vector.shape_cast %63 : vector<8xf32> to vector<8x1xf32>
    %cst_28 = arith.constant 3.200000e+01 : f32
    %65 = vector.broadcast %cst_28 : f32 to vector<8x1xf32>
    %66 = arith.divf %64, %65 : vector<8x1xf32>
    %67 = vector.broadcast %57 : vector<8x1xf32> to vector<8x32xf32>
    %68 = arith.subf %53, %67 : vector<8x32xf32>
    %cst_29 = arith.constant 9.99999974E-6 : f32
    %69 = vector.broadcast %cst_29 : f32 to vector<8x1xf32>
    %70 = arith.addf %66, %69 : vector<8x1xf32>
    %71 = math.rsqrt %70 : vector<8x1xf32>
    %72 = vector.broadcast %71 : vector<8x1xf32> to vector<8x32xf32>
    %73 = arith.mulf %68, %72 : vector<8x32xf32>
    %c0_30 = arith.constant 0 : index
    %c0_31 = arith.constant 0 : index
    %74 = vector.load %arg15[%c0_30, %c0_31] : memref<1x32xf32, #tpu.memory_space<vmem>>, vector<1x32xf32>
    %75 = vector.broadcast %74 : vector<1x32xf32> to vector<8x32xf32>
    %76 = arith.mulf %73, %75 : vector<8x32xf32>
    %c0_32 = arith.constant 0 : index
    %c0_33 = arith.constant 0 : index
    %77 = vector.load %arg16[%c0_32, %c0_33] : memref<1x32xf32, #tpu.memory_space<vmem>>, vector<1x32xf32>
    %78 = vector.broadcast %77 : vector<1x32xf32> to vector<8x32xf32>
    %79 = arith.addf %76, %78 : vector<8x32xf32>
    %c0_34 = arith.constant 0 : index
    %c0_35 = arith.constant 0 : index
    %80 = vector.load %arg11[%c0_34, %c0_35] : memref<32x64xf32, #tpu.memory_space<vmem>>, vector<32x64xf32>
    %cst_36 = arith.constant dense<0.000000e+00> : vector<8x64xf32>
    %81 = tpu.matmul %79, %80, %cst_36 {dimension_numbers = #tpu.dot_dimension_numbers<[1], [0], [0], [1], [0, 0, 1, 1], [], []>} : vector<8x32xf32>, vector<32x64xf32>, vector<8x64xf32> -> vector<8x64xf32>
    %c0_37 = arith.constant 0 : index
    %c0_38 = arith.constant 0 : index
    %82 = vector.load %arg12[%c0_37, %c0_38] : memref<1x64xf32, #tpu.memory_space<vmem>>, vector<1x64xf32>
    %83 = vector.broadcast %82 : vector<1x64xf32> to vector<8x64xf32>
    %84 = arith.addf %81, %83 : vector<8x64xf32>
    %cst_39 = arith.constant 0.000000e+00 : f32
    %85 = vector.broadcast %cst_39 : f32 to vector<8x64xf32>
    %86 = arith.maximumf %84, %85 : vector<8x64xf32>
    %c0_40 = arith.constant 0 : index
    %c0_41 = arith.constant 0 : index
    %87 = vector.load %arg13[%c0_40, %c0_41] : memref<64x32xf32, #tpu.memory_space<vmem>>, vector<64x32xf32>
    %cst_42 = arith.constant dense<0.000000e+00> : vector<8x32xf32>
    %88 = tpu.matmul %86, %87, %cst_42 {dimension_numbers = #tpu.dot_dimension_numbers<[1], [0], [0], [1], [0, 0, 1, 1], [], []>} : vector<8x64xf32>, vector<64x32xf32>, vector<8x32xf32> -> vector<8x32xf32>
    %c0_43 = arith.constant 0 : index
    %c0_44 = arith.constant 0 : index
    %89 = vector.load %arg14[%c0_43, %c0_44] : memref<1x32xf32, #tpu.memory_space<vmem>>, vector<1x32xf32>
    %90 = vector.broadcast %89 : vector<1x32xf32> to vector<8x32xf32>
    %91 = arith.addf %88, %90 : vector<8x32xf32>
    %92 = arith.addf %79, %91 : vector<8x32xf32>
    %cst_45 = arith.constant dense<0.000000e+00> : vector<8xf32>
    %93 = vector.multi_reduction <add>, %92, %cst_45 [1] : vector<8x32xf32> to vector<8xf32>
    %94 = vector.shape_cast %93 : vector<8xf32> to vector<8x1xf32>
    %cst_46 = arith.constant 3.200000e+01 : f32
    %95 = vector.broadcast %cst_46 : f32 to vector<8x1xf32>
    %96 = arith.divf %94, %95 : vector<8x1xf32>
    %97 = vector.broadcast %96 : vector<8x1xf32> to vector<8x32xf32>
    %98 = arith.subf %92, %97 : vector<8x32xf32>
    %99 = vector.broadcast %96 : vector<8x1xf32> to vector<8x32xf32>
    %100 = arith.subf %92, %99 : vector<8x32xf32>
    %101 = arith.mulf %98, %100 : vector<8x32xf32>
    %cst_47 = arith.constant dense<0.000000e+00> : vector<8xf32>
    %102 = vector.multi_reduction <add>, %101, %cst_47 [1] : vector<8x32xf32> to vector<8xf32>
    %103 = vector.shape_cast %102 : vector<8xf32> to vector<8x1xf32>
    %cst_48 = arith.constant 3.200000e+01 : f32
    %104 = vector.broadcast %cst_48 : f32 to vector<8x1xf32>
    %105 = arith.divf %103, %104 : vector<8x1xf32>
    %106 = vector.broadcast %96 : vector<8x1xf32> to vector<8x32xf32>
    %107 = arith.subf %92, %106 : vector<8x32xf32>
    %cst_49 = arith.constant 9.99999974E-6 : f32
    %108 = vector.broadcast %cst_49 : f32 to vector<8x1xf32>
    %109 = arith.addf %105, %108 : vector<8x1xf32>
    %110 = math.rsqrt %109 : vector<8x1xf32>
    %111 = vector.broadcast %110 : vector<8x1xf32> to vector<8x32xf32>
    %112 = arith.mulf %107, %111 : vector<8x32xf32>
    %c0_50 = arith.constant 0 : index
    %c0_51 = arith.constant 0 : index
    %113 = vector.load %arg17[%c0_50, %c0_51] : memref<1x32xf32, #tpu.memory_space<vmem>>, vector<1x32xf32>
    %114 = vector.broadcast %113 : vector<1x32xf32> to vector<8x32xf32>
    %115 = arith.mulf %112, %114 : vector<8x32xf32>
    %c0_52 = arith.constant 0 : index
    %c0_53 = arith.constant 0 : index
    %116 = vector.load %arg18[%c0_52, %c0_53] : memref<1x32xf32, #tpu.memory_space<vmem>>, vector<1x32xf32>
    %117 = vector.broadcast %116 : vector<1x32xf32> to vector<8x32xf32>
    %118 = arith.addf %115, %117 : vector<8x32xf32>
    %c0_54 = arith.constant 0 : index
    %c0_55 = arith.constant 0 : index
    %c0_56 = arith.constant 0 : index
    %119 = vector.load %arg19[%c0_54, %c0_55, %c0_56] : memref<1x8x32xf32, #tpu.memory_space<vmem>>, vector<1x8x32xf32>
    %120 = vector.shape_cast %119 : vector<1x8x32xf32> to vector<8x32xf32>
    %121 = vector.shape_cast %118 : vector<8x32xf32> to vector<1x8x32xf32>
    tpu.vector_store %arg19[%c0_54, %c0_55, %c0_56], %121 {strides = array<i32>} : memref<1x8x32xf32, #tpu.memory_space<vmem>>, vector<1x8x32xf32>,
    return
  }
  func.func @transform_0(%arg0: i32, %arg1: i32) -> (i32, i32, i32) {
    %c0_i32 = arith.constant 0 : i32
    %c0_i32_0 = arith.constant 0 : i32
    %c0_i32_1 = arith.constant 0 : i32
    return %arg0, %c0_i32, %c0_i32_0 : i32, i32, i32
  }
  func.func @transform_1(%arg0: i32, %arg1: i32) -> (i32, i32) {
    %c0_i32 = arith.constant 0 : i32
    %c0_i32_0 = arith.constant 0 : i32
    %c0_i32_1 = arith.constant 0 : i32
    return %c0_i32, %c0_i32_0 : i32, i32
  }
  func.func @transform_2(%arg0: i32, %arg1: i32) -> (i32, i32) {
    %c0_i32 = arith.constant 0 : i32
    %c0_i32_0 = arith.constant 0 : i32
    %c0_i32_1 = arith.constant 0 : i32
    return %c0_i32, %c0_i32_0 : i32, i32
  }
  func.func @transform_3(%arg0: i32, %arg1: i32) -> (i32, i32) {
    %c0_i32 = arith.constant 0 : i32
    %c0_i32_0 = arith.constant 0 : i32
    %c0_i32_1 = arith.constant 0 : i32
    return %c0_i32, %c0_i32_0 : i32, i32
  }
  func.func @transform_4(%arg0: i32, %arg1: i32) -> (i32, i32) {
    %c0_i32 = arith.constant 0 : i32
    %c0_i32_0 = arith.constant 0 : i32
    %c0_i32_1 = arith.constant 0 : i32
    return %c0_i32, %c0_i32_0 : i32, i32
  }
  func.func @transform_5(%arg0: i32, %arg1: i32) -> (i32, i32) {
    %c0_i32 = arith.constant 0 : i32
    %c0_i32_0 = arith.constant 0 : i32
    %c0_i32_1 = arith.constant 0 : i32
    return %c0_i32, %c0_i32_0 : i32, i32
  }
  func.func @transform_6(%arg0: i32, %arg1: i32) -> (i32, i32) {
    %c0_i32 = arith.constant 0 : i32
    %c0_i32_0 = arith.constant 0 : i32
    %c0_i32_1 = arith.constant 0 : i32
    return %c0_i32, %c0_i32_0 : i32, i32
  }
  func.func @transform_7(%arg0: i32, %arg1: i32) -> (i32, i32) {
    %c0_i32 = arith.constant 0 : i32
    %c0_i32_0 = arith.constant 0 : i32
    %c0_i32_1 = arith.constant 0 : i32
    return %c0_i32, %c0_i32_0 : i32, i32
  }
  func.func @transform_8(%arg0: i32, %arg1: i32) -> (i32, i32) {
    %c0_i32 = arith.constant 0 : i32
    %c0_i32_0 = arith.constant 0 : i32
    %c0_i32_1 = arith.constant 0 : i32
    return %c0_i32, %c0_i32_0 : i32, i32
  }
  func.func @transform_9(%arg0: i32, %arg1: i32) -> (i32, i32) {
    %c0_i32 = arith.constant 0 : i32
    %c0_i32_0 = arith.constant 0 : i32
    %c0_i32_1 = arith.constant 0 : i32
    return %c0_i32, %c0_i32_0 : i32, i32
  }
  func.func @transform_10(%arg0: i32, %arg1: i32) -> (i32, i32) {
    %c0_i32 = arith.constant 0 : i32
    %c0_i32_0 = arith.constant 0 : i32
    %c0_i32_1 = arith.constant 0 : i32
    return %c0_i32, %c0_i32_0 : i32, i32
  }
  func.func @transform_11(%arg0: i32, %arg1: i32) -> (i32, i32) {
    %c0_i32 = arith.constant 0 : i32
    %c0_i32_0 = arith.constant 0 : i32
    %c0_i32_1 = arith.constant 0 : i32
    return %c0_i32, %c0_i32_0 : i32, i32
  }
  func.func @transform_12(%arg0: i32, %arg1: i32) -> (i32, i32) {
    %c0_i32 = arith.constant 0 : i32
    %c0_i32_0 = arith.constant 0 : i32
    %c0_i32_1 = arith.constant 0 : i32
    return %c0_i32, %c0_i32_0 : i32, i32
  }
  func.func @transform_13(%arg0: i32, %arg1: i32) -> (i32, i32) {
    %c0_i32 = arith.constant 0 : i32
    %c0_i32_0 = arith.constant 0 : i32
    %c0_i32_1 = arith.constant 0 : i32
    return %c0_i32, %c0_i32_0 : i32, i32
  }
  func.func @transform_14(%arg0: i32, %arg1: i32) -> (i32, i32) {
    %c0_i32 = arith.constant 0 : i32
    %c0_i32_0 = arith.constant 0 : i32
    %c0_i32_1 = arith.constant 0 : i32
    return %c0_i32, %c0_i32_0 : i32, i32
  }
  func.func @transform_15(%arg0: i32, %arg1: i32) -> (i32, i32) {
    %c0_i32 = arith.constant 0 : i32
    %c0_i32_0 = arith.constant 0 : i32
    %c0_i32_1 = arith.constant 0 : i32
    return %c0_i32, %c0_i32_0 : i32, i32
  }
  func.func @transform_16(%arg0: i32, %arg1: i32) -> (i32, i32) {
    %c0_i32 = arith.constant 0 : i32
    %c0_i32_0 = arith.constant 0 : i32
    %c0_i32_1 = arith.constant 0 : i32
    return %c0_i32, %c0_i32_0 : i32, i32
  }
  func.func @transform_17(%arg0: i32, %arg1: i32) -> (i32, i32, i32) {
    %c0_i32 = arith.constant 0 : i32
    %c0_i32_0 = arith.constant 0 : i32
    return %arg0, %arg1, %c0_i32 : i32, i32, i32
  }
}

</mosaic_0001>

<llo_original>
// kernel: tpu_custom_call.1
$region0: #{tpu_custom_call.1}
  #allocation0 [shape = 'u32[]', space=smem, size = 0x4, offset = 0x4, fixed_abs, tag = 'smem constant byte address 0x4 - core index']
  #allocation1 [shape = 'u32[144,128]{1,0:T(1,128)}', space=vmem, size = 0x12000, scoped, tag = 'internal scratch']
  #allocation2 [shape = 'f32[4,8,8]{2,1,0:T(8,128)}', space=vmem, size = 0x4000, scoped, tag = 'scratch operand']
  #allocation3 [shape = 'f32[4,8,8]{2,1,0:T(8,128)}', space=vmem, size = 0x4000, scoped, tag = 'scratch operand']
  %s0 = inlined_call_operand.hbm [shape: f32[2,8,32], index: 0, kind: input, shape index: {}]
  %s1 = inlined_call_operand.vmem [shape: f32[32,32], index: 1, kind: input, shape index: {}]
  %s2 = inlined_call_operand.vmem [shape: f32[1,32], index: 2, kind: input, shape index: {}]
  %s3 = inlined_call_operand.vmem [shape: f32[32,32], index: 3, kind: input, shape index: {}]
  %s4 = inlined_call_operand.vmem [shape: f32[1,32], index: 4, kind: input, shape index: {}]
  %s5 = inlined_call_operand.vmem [shape: f32[32,32], index: 5, kind: input, shape index: {}]
  %s6 = inlined_call_operand.vmem [shape: f32[1,32], index: 6, kind: input, shape index: {}]
  %s7 = inlined_call_operand.hbm [shape: f32[32,32], index: 7, kind: input, shape index: {}]
  %s8 = inlined_call_operand.vmem [shape: f32[1,32], index: 8, kind: input, shape index: {}]
  %s9 = inlined_call_operand.hbm [shape: f32[32,64], index: 9, kind: input, shape index: {}]
  %s10 = inlined_call_operand.vmem [shape: f32[1,64], index: 10, kind: input, shape index: {}]
  %s11 = inlined_call_operand.vmem [shape: f32[64,32], index: 11, kind: input, shape index: {}]
  %s12 = inlined_call_operand.vmem [shape: f32[1,32], index: 12, kind: input, shape index: {}]
  %s13 = inlined_call_operand.vmem [shape: f32[1,32], index: 13, kind: input, shape index: {}]
  %s14 = inlined_call_operand.vmem [shape: f32[1,32], index: 14, kind: input, shape index: {}]
  %s15 = inlined_call_operand.vmem [shape: f32[1,32], index: 15, kind: input, shape index: {}]
  %s16 = inlined_call_operand.vmem [shape: f32[1,32], index: 16, kind: input, shape index: {}]
  %s17 = inlined_call_operand.hbm [shape: f32[2,8,32], index: 17, kind: output, shape index: {}]
  %s18 = sld [smem:[#allocation0]]
  $region117: #{tpu_custom_call.1} parent=0
    _
  %s20 = ssub.s32 1, %s18
  %s21 = scalar_select 0, %s20, %s18
  $region1: #{tpu_custom_call.1} parent=0
    #allocation4 [shape = 'u8[8192]{0}', space=vmem, size = 0x2000, scoped, tag = 'input window, operand 0']
    #allocation5 [shape = 's32[2]{0}', space=sflag, size = 0x8, scoped, tag = 'scoped memory for tpu_custom_call.1']
    #allocation6 [shape = 's32[2]{0}', space=sflag, size = 0x8, scoped, tag = 'scoped memory for tpu_custom_call.1']
    #allocation7 [shape = 'u8[16384]{0}', space=vmem, size = 0x4000, scoped, tag = 'input window, operand 7, single buffered']
    #allocation8 [shape = 's32[1]{0}', space=sflag, size = 0x4, scoped, tag = 'scoped memory for tpu_custom_call.1']
    #allocation9 [shape = 'u8[16384]{0}', space=vmem, size = 0x4000, scoped, tag = 'input window, operand 9, single buffered']
    #allocation10 [shape = 'u8[8192]{0}', space=vmem, size = 0x2000, scoped, tag = 'output window, operand 0']
    %22 = vsyncpa [#allocation5], 0
    %s23 = scalar_lea.sflag [#allocation5], 1
    %24 = vsyncpa %s23, 0
    %25 = vsyncpa [#allocation8], 0
    %26 = vsyncpa [#allocation6], 0
    %s27 = scalar_lea.sflag [#allocation6], 1
    %28 = vsyncpa %s27, 0
    loop: start=0, step=1, limit=4
    $region2: #{tpu_custom_call.1} parent=1 // loop_pre_header
      _
    $region3: #{tpu_custom_call.1} parent=1 // loop_header
      %s30 = sphi 0, %s34
      %p31 = scmp.ge.s32.totalorder %s30, 4
      %s37 = sphi 0, %s49
      %s38 = sphi 0, %s45
      %s39 = sphi 0, %s37
      %s40 = sphi 0, %s38
      %s41 = sphi 0, %s39
      %s42 = sphi 0, %s40
      %s52 = sphi 0, %s54
      %s55 = sphi 0, %s52
      %s56 = sphi 0, %s55
      %s72 = sphi 0, %s56
      %s76 = sphi 0, %s76
      %s78 = sphi 0, %s76
      %s79 = sphi 0, %s78
      %s93 = sphi 0, %s79
      %s97 = sphi 0, %s97
      %s99 = sphi 0, %s97
      %s100 = sphi 0, %s99
      %s114 = sphi 0, %s100
      %s118 = sphi 0, %s118
      %s120 = sphi 0, %s118
      %s121 = sphi 0, %s120
      %s135 = sphi 0, %s121
      %s139 = sphi 0, %s139
      %s141 = sphi 0, %s139
      %s142 = sphi 0, %s141
      %s156 = sphi 0, %s142
      %s160 = sphi 0, %s160
      %s162 = sphi 0, %s160
      %s163 = sphi 0, %s162
      %s177 = sphi 0, %s163
      %s181 = sphi 0, %s181
      %s183 = sphi 0, %s181
      %s184 = sphi 0, %s183
      %s198 = sphi 0, %s184
      %s202 = sphi 0, %s202
      %s204 = sphi 0, %s202
      %s205 = sphi 0, %s204
      %s219 = sphi 0, %s205
      %s223 = sphi 0, %s223
      %s225 = sphi 0, %s223
      %s226 = sphi 0, %s225
      %s240 = sphi 0, %s226
      %s244 = sphi 0, %s244
      %s246 = sphi 0, %s244
      %s247 = sphi 0, %s246
      %s261 = sphi 0, %s247
      %s265 = sphi 0, %s265
      %s267 = sphi 0, %s265
      %s268 = sphi 0, %s267
      %s282 = sphi 0, %s268
      %s286 = sphi 0, %s286
      %s288 = sphi 0, %s286
      %s289 = sphi 0, %s288
      %s303 = sphi 0, %s289
      %s307 = sphi 0, %s307
      %s309 = sphi 0, %s307
      %s310 = sphi 0, %s309
      %s324 = sphi 0, %s310
      %s328 = sphi 0, %s328
      %s330 = sphi 0, %s328
      %s331 = sphi 0, %s330
      %s345 = sphi 0, %s331
      %s349 = sphi 0, %s349
      %s351 = sphi 0, %s349
      %s352 = sphi 0, %s351
      %s366 = sphi 0, %s352
      %s370 = sphi 0, %s370
      %s372 = sphi 0, %s370
      %s373 = sphi 0, %s372
      %s387 = sphi 0, %s373
      %s391 = sphi 0, %s391
      %s393 = sphi 0, %s391
      %s394 = sphi 0, %s393
      %s408 = sphi 0, %s394
      %s416 = sphi 0, %s418
      %s419 = sphi 0, %s416
      %s420 = sphi 0, %s419
      %s436 = sphi 0, %s420
    $region4: #{tpu_custom_call.1} parent=1 // loop_header_branch
      %33 = sbr.rel (%p31) target = $region8
    $region5: #{tpu_custom_call.1} parent=1 // loop_body
      %s35 = ssub.s32 %s30, 1
      %s36 = ssub.s32 %s30, 2
      %s43 = sadd.s32 1, %s38
      %p44 = scmp.ge.s32.totalorder %s43, 1
      %s45 = scalar_select %p44, 0, %s43
      %s46 = sadd.s32 1, %s37
      %s47 = scalar_select %p44, %s46, %s37
      %p48 = scmp.ge.s32.totalorder %s47, 2
      %s49 = scalar_select %p48, 0, %s47
      %s50 = ssub.s32 %s37, %s49
      %p51 = scmp.eq.s32.totalorder %s50, 0
      %s53 = sadd.s32 %s52, 1
      %s54 = scalar_select %p51, %s52, %s53
      %p57 = pneg %p51
      %p58 = scmp.eq.s32.totalorder %s30, 1
      %p59 = por %p57, %p58
      %p60 = scmp.ne.s32.totalorder %s52, %s55
      %p61 = scmp.eq.s32.totalorder %s30, 0
      %p62 = por %p60, %p61
      %p63 = scmp.ne.s32.totalorder %s52, %s55
      %p64 = scmp.eq.s32.totalorder %s35, 1
      %p65 = por %p63, %p64
      %p66 = scmp.ne.s32.totalorder %s55, %s56
      %p67 = scmp.eq.s32.totalorder %s35, 0
      %p68 = por %p66, %p67
      %p69 = scmp.ne.s32.totalorder %s55, %s56
      %p70 = scmp.eq.s32.totalorder %s36, 1
      %p71 = por %p69, %p70
      %p73 = scmp.ne.s32.totalorder %s56, %s72
      %p74 = scmp.eq.s32.totalorder %s36, 0
      %p75 = por %p73, %p74
      %s77 = sadd.s32 %s76, 1
      %p80 = scmp.eq.s32.totalorder %s30, 1
      %p81 = scmp.ne.s32.totalorder %s76, %s78
      %p82 = scmp.eq.s32.totalorder %s30, 0
      %p83 = por %p81, %p82
      %p84 = scmp.ne.s32.totalorder %s76, %s78
      %p85 = scmp.eq.s32.totalorder %s35, 1
      %p86 = por %p84, %p85
      %p87 = scmp.ne.s32.totalorder %s78, %s79
      %p88 = scmp.eq.s32.totalorder %s35, 0
      %p89 = por %p87, %p88
      %p90 = scmp.ne.s32.totalorder %s78, %s79
      %p91 = scmp.eq.s32.totalorder %s36, 1
      %p92 = por %p90, %p91
      %p94 = scmp.ne.s32.totalorder %s79, %s93
      %p95 = scmp.eq.s32.totalorder %s36, 0
      %p96 = por %p94, %p95
      %s98 = sadd.s32 %s97, 1
      %p101 = scmp.eq.s32.totalorder %s30, 1
      %p102 = scmp.ne.s32.totalorder %s97, %s99
      %p103 = scmp.eq.s32.totalorder %s30, 0
      %p104 = por %p102, %p103
      %p105 = scmp.ne.s32.totalorder %s97, %s99
      %p106 = scmp.eq.s32.totalorder %s35, 1
      %p107 = por %p105, %p106
      %p108 = scmp.ne.s32.totalorder %s99, %s100
      %p109 = scmp.eq.s32.totalorder %s35, 0
      %p110 = por %p108, %p109
      %p111 = scmp.ne.s32.totalorder %s99, %s100
      %p112 = scmp.eq.s32.totalorder %s36, 1
      %p113 = por %p111, %p112
      %p115 = scmp.ne.s32.totalorder %s100, %s114
      %p116 = scmp.eq.s32.totalorder %s36, 0
      %p117 = por %p115, %p116
      %s119 = sadd.s32 %s118, 1
      %p122 = scmp.eq.s32.totalorder %s30, 1
      %p123 = scmp.ne.s32.totalorder %s118, %s120
      %p124 = scmp.eq.s32.totalorder %s30, 0
      %p125 = por %p123, %p124
      %p126 = scmp.ne.s32.totalorder %s118, %s120
      %p127 = scmp.eq.s32.totalorder %s35, 1
      %p128 = por %p126, %p127
      %p129 = scmp.ne.s32.totalorder %s120, %s121
      %p130 = scmp.eq.s32.totalorder %s35, 0
      %p131 = por %p129, %p130
      %p132 = scmp.ne.s32.totalorder %s120, %s121
      %p133 = scmp.eq.s32.totalorder %s36, 1
      %p134 = por %p132, %p133
      %p136 = scmp.ne.s32.totalorder %s121, %s135
      %p137 = scmp.eq.s32.totalorder %s36, 0
      %p138 = por %p136, %p137
      %s140 = sadd.s32 %s139, 1
      %p143 = scmp.eq.s32.totalorder %s30, 1
      %p144 = scmp.ne.s32.totalorder %s139, %s141
      %p145 = scmp.eq.s32.totalorder %s30, 0
      %p146 = por %p144, %p145
      %p147 = scmp.ne.s32.totalorder %s139, %s141
      %p148 = scmp.eq.s32.totalorder %s35, 1
      %p149 = por %p147, %p148
      %p150 = scmp.ne.s32.totalorder %s141, %s142
      %p151 = scmp.eq.s32.totalorder %s35, 0
      %p152 = por %p150, %p151
      %p153 = scmp.ne.s32.totalorder %s141, %s142
      %p154 = scmp.eq.s32.totalorder %s36, 1
      %p155 = por %p153, %p154
      %p157 = scmp.ne.s32.totalorder %s142, %s156
      %p158 = scmp.eq.s32.totalorder %s36, 0
      %p159 = por %p157, %p158
      %s161 = sadd.s32 %s160, 1
      %p164 = scmp.eq.s32.totalorder %s30, 1
      %p165 = scmp.ne.s32.totalorder %s160, %s162
      %p166 = scmp.eq.s32.totalorder %s30, 0
      %p167 = por %p165, %p166
      %p168 = scmp.ne.s32.totalorder %s160, %s162
      %p169 = scmp.eq.s32.totalorder %s35, 1
      %p170 = por %p168, %p169
      %p171 = scmp.ne.s32.totalorder %s162, %s163
      %p172 = scmp.eq.s32.totalorder %s35, 0
      %p173 = por %p171, %p172
      %p174 = scmp.ne.s32.totalorder %s162, %s163
      %p175 = scmp.eq.s32.totalorder %s36, 1
      %p176 = por %p174, %p175
      %p178 = scmp.ne.s32.totalorder %s163, %s177
      %p179 = scmp.eq.s32.totalorder %s36, 0
      %p180 = por %p178, %p179
      %s182 = sadd.s32 %s181, 1
      %p185 = scmp.eq.s32.totalorder %s30, 1
      %p186 = scmp.ne.s32.totalorder %s181, %s183
      %p187 = scmp.eq.s32.totalorder %s30, 0
      %p188 = por %p186, %p187
      %p189 = scmp.ne.s32.totalorder %s181, %s183
      %p190 = scmp.eq.s32.totalorder %s35, 1
      %p191 = por %p189, %p190
      %p192 = scmp.ne.s32.totalorder %s183, %s184
      %p193 = scmp.eq.s32.totalorder %s35, 0
      %p194 = por %p192, %p193
      %p195 = scmp.ne.s32.totalorder %s183, %s184
      %p196 = scmp.eq.s32.totalorder %s36, 1
      %p197 = por %p195, %p196
      %p199 = scmp.ne.s32.totalorder %s184, %s198
      %p200 = scmp.eq.s32.totalorder %s36, 0
      %p201 = por %p199, %p200
      %s203 = sadd.s32 %s202, 1
      %p206 = scmp.eq.s32.totalorder %s30, 1
      %p207 = scmp.ne.s32.totalorder %s202, %s204
      %p208 = scmp.eq.s32.totalorder %s30, 0
      %p209 = por %p207, %p208
      %p210 = scmp.ne.s32.totalorder %s202, %s204
      %p211 = scmp.eq.s32.totalorder %s35, 1
      %p212 = por %p210, %p211
      %p213 = scmp.ne.s32.totalorder %s204, %s205
      %p214 = scmp.eq.s32.totalorder %s35, 0
      %p215 = por %p213, %p214
      %p216 = scmp.ne.s32.totalorder %s204, %s205
      %p217 = scmp.eq.s32.totalorder %s36, 1
      %p218 = por %p216, %p217
      %p220 = scmp.ne.s32.totalorder %s205, %s219
      %p221 = scmp.eq.s32.totalorder %s36, 0
      %p222 = por %p220, %p221
      %s224 = sadd.s32 %s223, 1
      %p227 = scmp.eq.s32.totalorder %s30, 1
      %p228 = scmp.ne.s32.totalorder %s223, %s225
      %p229 = scmp.eq.s32.totalorder %s30, 0
      %p230 = por %p228, %p229
      %p231 = scmp.ne.s32.totalorder %s223, %s225
      %p232 = scmp.eq.s32.totalorder %s35, 1
      %p233 = por %p231, %p232
      %p234 = scmp.ne.s32.totalorder %s225, %s226
      %p235 = scmp.eq.s32.totalorder %s35, 0
      %p236 = por %p234, %p235
      %p237 = scmp.ne.s32.totalorder %s225, %s226
      %p238 = scmp.eq.s32.totalorder %s36, 1
      %p239 = por %p237, %p238
      %p241 = scmp.ne.s32.totalorder %s226, %s240
      %p242 = scmp.eq.s32.totalorder %s36, 0
      %p243 = por %p241, %p242
      %s245 = sadd.s32 %s244, 1
      %p248 = scmp.eq.s32.totalorder %s30, 1
      %p249 = scmp.ne.s32.totalorder %s244, %s246
      %p250 = scmp.eq.s32.totalorder %s30, 0
      %p251 = por %p249, %p250
      %p252 = scmp.ne.s32.totalorder %s244, %s246
      %p253 = scmp.eq.s32.totalorder %s35, 1
      %p254 = por %p252, %p253
      %p255 = scmp.ne.s32.totalorder %s246, %s247
      %p256 = scmp.eq.s32.totalorder %s35, 0
      %p257 = por %p255, %p256
      %p258 = scmp.ne.s32.totalorder %s246, %s247
      %p259 = scmp.eq.s32.totalorder %s36, 1
      %p260 = por %p258, %p259
      %p262 = scmp.ne.s32.totalorder %s247, %s261
      %p263 = scmp.eq.s32.totalorder %s36, 0
      %p264 = por %p262, %p263
      %s266 = sadd.s32 %s265, 1
      %p269 = scmp.eq.s32.totalorder %s30, 1
      %p270 = scmp.ne.s32.totalorder %s265, %s267
      %p271 = scmp.eq.s32.totalorder %s30, 0
      %p272 = por %p270, %p271
      %p273 = scmp.ne.s32.totalorder %s265, %s267
      %p274 = scmp.eq.s32.totalorder %s35, 1
      %p275 = por %p273, %p274
      %p276 = scmp.ne.s32.totalorder %s267, %s268
      %p277 = scmp.eq.s32.totalorder %s35, 0
      %p278 = por %p276, %p277
      %p279 = scmp.ne.s32.totalorder %s267, %s268
      %p280 = scmp.eq.s32.totalorder %s36, 1
      %p281 = por %p279, %p280
      %p283 = scmp.ne.s32.totalorder %s268, %s282
      %p284 = scmp.eq.s32.totalorder %s36, 0
      %p285 = por %p283, %p284
      %s287 = sadd.s32 %s286, 1
      %p290 = scmp.eq.s32.totalorder %s30, 1
      %p291 = scmp.ne.s32.totalorder %s286, %s288
      %p292 = scmp.eq.s32.totalorder %s30, 0
      %p293 = por %p291, %p292
      %p294 = scmp.ne.s32.totalorder %s286, %s288
      %p295 = scmp.eq.s32.totalorder %s35, 1
      %p296 = por %p294, %p295
      %p297 = scmp.ne.s32.totalorder %s288, %s289
      %p298 = scmp.eq.s32.totalorder %s35, 0
      %p299 = por %p297, %p298
      %p300 = scmp.ne.s32.totalorder %s288, %s289
      %p301 = scmp.eq.s32.totalorder %s36, 1
      %p302 = por %p300, %p301
      %p304 = scmp.ne.s32.totalorder %s289, %s303
      %p305 = scmp.eq.s32.totalorder %s36, 0
      %p306 = por %p304, %p305
      %s308 = sadd.s32 %s307, 1
      %p311 = scmp.eq.s32.totalorder %s30, 1
      %p312 = scmp.ne.s32.totalorder %s307, %s309
      %p313 = scmp.eq.s32.totalorder %s30, 0
      %p314 = por %p312, %p313
      %p315 = scmp.ne.s32.totalorder %s307, %s309
      %p316 = scmp.eq.s32.totalorder %s35, 1
      %p317 = por %p315, %p316
      %p318 = scmp.ne.s32.totalorder %s309, %s310
      %p319 = scmp.eq.s32.totalorder %s35, 0
      %p320 = por %p318, %p319
      %p321 = scmp.ne.s32.totalorder %s309, %s310
      %p322 = scmp.eq.s32.totalorder %s36, 1
      %p323 = por %p321, %p322
      %p325 = scmp.ne.s32.totalorder %s310, %s324
      %p326 = scmp.eq.s32.totalorder %s36, 0
      %p327 = por %p325, %p326
      %s329 = sadd.s32 %s328, 1
      %p332 = scmp.eq.s32.totalorder %s30, 1
      %p333 = scmp.ne.s32.totalorder %s328, %s330
      %p334 = scmp.eq.s32.totalorder %s30, 0
      %p335 = por %p333, %p334
      %p336 = scmp.ne.s32.totalorder %s328, %s330
      %p337 = scmp.eq.s32.totalorder %s35, 1
      %p338 = por %p336, %p337
      %p339 = scmp.ne.s32.totalorder %s330, %s331
      %p340 = scmp.eq.s32.totalorder %s35, 0
      %p341 = por %p339, %p340
      %p342 = scmp.ne.s32.totalorder %s330, %s331
      %p343 = scmp.eq.s32.totalorder %s36, 1
      %p344 = por %p342, %p343
      %p346 = scmp.ne.s32.totalorder %s331, %s345
      %p347 = scmp.eq.s32.totalorder %s36, 0
      %p348 = por %p346, %p347
      %s350 = sadd.s32 %s349, 1
      %p353 = scmp.eq.s32.totalorder %s30, 1
      %p354 = scmp.ne.s32.totalorder %s349, %s351
      %p355 = scmp.eq.s32.totalorder %s30, 0
      %p356 = por %p354, %p355
      %p357 = scmp.ne.s32.totalorder %s349, %s351
      %p358 = scmp.eq.s32.totalorder %s35, 1
      %p359 = por %p357, %p358
      %p360 = scmp.ne.s32.totalorder %s351, %s352
      %p361 = scmp.eq.s32.totalorder %s35, 0
      %p362 = por %p360, %p361
      %p363 = scmp.ne.s32.totalorder %s351, %s352
      %p364 = scmp.eq.s32.totalorder %s36, 1
      %p365 = por %p363, %p364
      %p367 = scmp.ne.s32.totalorder %s352, %s366
      %p368 = scmp.eq.s32.totalorder %s36, 0
      %p369 = por %p367, %p368
      %s371 = sadd.s32 %s370, 1
      %p374 = scmp.eq.s32.totalorder %s30, 1
      %p375 = scmp.ne.s32.totalorder %s370, %s372
      %p376 = scmp.eq.s32.totalorder %s30, 0
      %p377 = por %p375, %p376
      %p378 = scmp.ne.s32.totalorder %s370, %s372
      %p379 = scmp.eq.s32.totalorder %s35, 1
      %p380 = por %p378, %p379
      %p381 = scmp.ne.s32.totalorder %s372, %s373
      %p382 = scmp.eq.s32.totalorder %s35, 0
      %p383 = por %p381, %p382
      %p384 = scmp.ne.s32.totalorder %s372, %s373
      %p385 = scmp.eq.s32.totalorder %s36, 1
      %p386 = por %p384, %p385
      %p388 = scmp.ne.s32.totalorder %s373, %s387
      %p389 = scmp.eq.s32.totalorder %s36, 0
      %p390 = por %p388, %p389
      %s392 = sadd.s32 %s391, 1
      %p395 = scmp.eq.s32.totalorder %s30, 1
      %p396 = scmp.ne.s32.totalorder %s391, %s393
      %p397 = scmp.eq.s32.totalorder %s30, 0
      %p398 = por %p396, %p397
      %p399 = scmp.ne.s32.totalorder %s391, %s393
      %p400 = scmp.eq.s32.totalorder %s35, 1
      %p401 = por %p399, %p400
      %p402 = scmp.ne.s32.totalorder %s393, %s394
      %p403 = scmp.eq.s32.totalorder %s35, 0
      %p404 = por %p402, %p403
      %p405 = scmp.ne.s32.totalorder %s393, %s394
      %p406 = scmp.eq.s32.totalorder %s36, 1
      %p407 = por %p405, %p406
      %p409 = scmp.ne.s32.totalorder %s394, %s408
      %p410 = scmp.eq.s32.totalorder %s36, 0
      %p411 = por %p409, %p410
      %s412 = ssub.s32 %s37, %s49
      %s413 = ssub.s32 %s38, %s45
      %s414 = sor.u32 %s412, %s413
      %p415 = scmp.eq.s32.totalorder %s414, 0
      %s417 = sadd.s32 %s416, 1
      %s418 = scalar_select %p415, %s416, %s417
      %p421 = pneg %p415
      %p422 = scmp.eq.s32.totalorder %s30, 1
      %p423 = por %p421, %p422
      %p424 = scmp.ne.s32.totalorder %s416, %s419
      %p425 = scmp.eq.s32.totalorder %s30, 0
      %p426 = por %p424, %p425
      %p427 = scmp.ne.s32.totalorder %s416, %s419
      %p428 = scmp.eq.s32.totalorder %s35, 1
      %p429 = por %p427, %p428
      %p430 = scmp.ne.s32.totalorder %s419, %s420
      %p431 = scmp.eq.s32.totalorder %s35, 0
      %p432 = por %p430, %p431
      %p433 = scmp.ne.s32.totalorder %s419, %s420
      %p434 = scmp.eq.s32.totalorder %s36, 1
      %p435 = por %p433, %p434
      %p437 = scmp.ne.s32.totalorder %s420, %s436
      %p438 = scmp.eq.s32.totalorder %s36, 0
      %p439 = por %p437, %p438
      %p440 = scmp.le.s32.totalorder 1, %s30
      %p441 = scmp.lt.s32.totalorder %s30, 3
      %p442 = pnand %p440, %p441
      %p443 = pneg %p442
      // Predicated region
      $region9: #{tpu_custom_call.1} parent=5 // pred_check
        _
      $region10: #{tpu_custom_call.1} parent=5 // pred_check_branch
        %445 = sbr.rel (%p442) target = $region12
      $region11: #{tpu_custom_call.1} parent=5 // pred_region
        %s446 = ssub.s32 %s30, 1
        // Predicated region
        $region13: #{tpu_custom_call.1} parent=11 // pred_check
          %p447 = pneg %p89
        $region14: #{tpu_custom_call.1} parent=11 // pred_check_branch
          %449 = sbr.rel (%p447) target = $region16
        $region15: #{tpu_custom_call.1} parent=11 // pred_region
          _
        $region16: #{tpu_custom_call.1} parent=11 // pred_fallthru
          _
        // Predicated region
        $region17: #{tpu_custom_call.1} parent=11 // pred_check
          %p450 = pneg %p110
        $region18: #{tpu_custom_call.1} parent=11 // pred_check_branch
          %452 = sbr.rel (%p450) target = $region20
        $region19: #{tpu_custom_call.1} parent=11 // pred_region
          _
        $region20: #{tpu_custom_call.1} parent=11 // pred_fallthru
          _
        // Predicated region
        $region21: #{tpu_custom_call.1} parent=11 // pred_check
          %p453 = pneg %p131
        $region22: #{tpu_custom_call.1} parent=11 // pred_check_branch
          %455 = sbr.rel (%p453) target = $region24
        $region23: #{tpu_custom_call.1} parent=11 // pred_region
          _
        $region24: #{tpu_custom_call.1} parent=11 // pred_fallthru
          _
        // Predicated region
        $region25: #{tpu_custom_call.1} parent=11 // pred_check
          %p456 = pneg %p152
        $region26: #{tpu_custom_call.1} parent=11 // pred_check_branch
          %458 = sbr.rel (%p456) target = $region28
        $region27: #{tpu_custom_call.1} parent=11 // pred_region
          _
        $region28: #{tpu_custom_call.1} parent=11 // pred_fallthru
          _
        // Predicated region
        $region29: #{tpu_custom_call.1} parent=11 // pred_check
          %p459 = pneg %p173
        $region30: #{tpu_custom_call.1} parent=11 // pred_check_branch
          %461 = sbr.rel (%p459) target = $region32
        $region31: #{tpu_custom_call.1} parent=11 // pred_region
          _
        $region32: #{tpu_custom_call.1} parent=11 // pred_fallthru
          _
        // Predicated region
        $region33: #{tpu_custom_call.1} parent=11 // pred_check
          %p462 = pneg %p194
        $region34: #{tpu_custom_call.1} parent=11 // pred_check_branch
          %464 = sbr.rel (%p462) target = $region36
        $region35: #{tpu_custom_call.1} parent=11 // pred_region
          _
        $region36: #{tpu_custom_call.1} parent=11 // pred_fallthru
          _
        // Predicated region
        $region37: #{tpu_custom_call.1} parent=11 // pred_check
          %p465 = pneg %p215
        $region38: #{tpu_custom_call.1} parent=11 // pred_check_branch
          %467 = sbr.rel (%p465) target = $region40
        $region39: #{tpu_custom_call.1} parent=11 // pred_region
          %s469 = ssub.s32 512, 512
          %470 = vsyncadd [#allocation8], %s469
          %s471 = sshll.u32 [#allocation7], 4
          %s472 = int_to_ptr.vmem [resolvable:$true] %s471
          %477 = dma.hbm_to_vmem [thread:$0]  %s7, 512, %s472, [#allocation8], 128, 128, 8
        $region40: #{tpu_custom_call.1} parent=11 // pred_fallthru
          _
        // Predicated region
        $region41: #{tpu_custom_call.1} parent=11 // pred_check
          %p478 = pneg %p236
        $region42: #{tpu_custom_call.1} parent=11 // pred_check_branch
          %480 = sbr.rel (%p478) target = $region44
        $region43: #{tpu_custom_call.1} parent=11 // pred_region
          _
        $region44: #{tpu_custom_call.1} parent=11 // pred_fallthru
          _
        // Predicated region
        $region45: #{tpu_custom_call.1} parent=11 // pred_check
          %p481 = pneg %p257
        $region46: #{tpu_custom_call.1} parent=11 // pred_check_branch
          %483 = sbr.rel (%p481) target = $region48
        $region47: #{tpu_custom_call.1} parent=11 // pred_region
          %s485 = ssub.s32 512, 512
          %486 = vsyncadd [#allocation8], %s485
          %s487 = sshll.u32 [#allocation9], 4
          %s488 = int_to_ptr.vmem [resolvable:$true] %s487
          %493 = dma.hbm_to_vmem [thread:$0]  %s9, 512, %s488, [#allocation8], 128, 128, 8
        $region48: #{tpu_custom_call.1} parent=11 // pred_fallthru
          _
        // Predicated region
        $region49: #{tpu_custom_call.1} parent=11 // pred_check
          %p494 = pneg %p278
        $region50: #{tpu_custom_call.1} parent=11 // pred_check_branch
          %496 = sbr.rel (%p494) target = $region52
        $region51: #{tpu_custom_call.1} parent=11 // pred_region
          _
        $region52: #{tpu_custom_call.1} parent=11 // pred_fallthru
          _
        // Predicated region
        $region53: #{tpu_custom_call.1} parent=11 // pred_check
          %p497 = pneg %p299
        $region54: #{tpu_custom_call.1} parent=11 // pred_check_branch
          %499 = sbr.rel (%p497) target = $region56
        $region55: #{tpu_custom_call.1} parent=11 // pred_region
          _
        $region56: #{tpu_custom_call.1} parent=11 // pred_fallthru
          _
        // Predicated region
        $region57: #{tpu_custom_call.1} parent=11 // pred_check
          %p500 = pneg %p320
        $region58: #{tpu_custom_call.1} parent=11 // pred_check_branch
          %502 = sbr.rel (%p500) target = $region60
        $region59: #{tpu_custom_call.1} parent=11 // pred_region
          _
        $region60: #{tpu_custom_call.1} parent=11 // pred_fallthru
          _
        // Predicated region
        $region61: #{tpu_custom_call.1} parent=11 // pred_check
          %p503 = pneg %p341
        $region62: #{tpu_custom_call.1} parent=11 // pred_check_branch
          %505 = sbr.rel (%p503) target = $region64
        $region63: #{tpu_custom_call.1} parent=11 // pred_region
          _
        $region64: #{tpu_custom_call.1} parent=11 // pred_fallthru
          _
        // Predicated region
        $region65: #{tpu_custom_call.1} parent=11 // pred_check
          %p506 = pneg %p362
        $region66: #{tpu_custom_call.1} parent=11 // pred_check_branch
          %508 = sbr.rel (%p506) target = $region68
        $region67: #{tpu_custom_call.1} parent=11 // pred_region
          _
        $region68: #{tpu_custom_call.1} parent=11 // pred_fallthru
          _
        // Predicated region
        $region69: #{tpu_custom_call.1} parent=11 // pred_check
          %p509 = pneg %p383
        $region70: #{tpu_custom_call.1} parent=11 // pred_check_branch
          %511 = sbr.rel (%p509) target = $region72
        $region71: #{tpu_custom_call.1} parent=11 // pred_region
          _
        $region72: #{tpu_custom_call.1} parent=11 // pred_fallthru
          _
        // Predicated region
        $region73: #{tpu_custom_call.1} parent=11 // pred_check
          %p512 = pneg %p404
        $region74: #{tpu_custom_call.1} parent=11 // pred_check_branch
          %514 = sbr.rel (%p512) target = $region76
        $region75: #{tpu_custom_call.1} parent=11 // pred_region
          _
        $region76: #{tpu_custom_call.1} parent=11 // pred_fallthru
          _
      $region12: #{tpu_custom_call.1} parent=5 // pred_fallthru
        _
      %p515 = scmp.lt.s32.totalorder %s30, 2
      // Predicated region
      $region77: #{tpu_custom_call.1} parent=5 // pred_check
        %p516 = pneg %p515
      $region78: #{tpu_custom_call.1} parent=5 // pred_check_branch
        %518 = sbr.rel (%p516) target = $region80
      $region79: #{tpu_custom_call.1} parent=5 // pred_region
        // Predicated region
        $region81: #{tpu_custom_call.1} parent=79 // pred_check
          %p519 = pneg %p62
        $region82: #{tpu_custom_call.1} parent=79 // pred_check_branch
          %521 = sbr.rel (%p519) target = $region84
        $region83: #{tpu_custom_call.1} parent=79 // pred_region
          %s522 = sand.u32 %s52, 1
          %s523 = scalar_lea.sflag [#allocation5], %s522
          %s524 = sand.u32 %s52, 1
          %s525 = smul.addr %s524, 8
          %s526 = scalar_lea.vmem [#allocation4], %s525
          %s528 = ssub.s32 128, 128
          %529 = vsyncadd %s523, %s528
          %s530 = smul.addr %s37, 128
          %s531 = scalar_lea.hbm %s0, %s530
          %s533 = sshll.u32 %s526, 4
          %s534 = int_to_ptr.vmem [resolvable:$true] %s533
          %536 = dma.hbm_to_vmem [thread:$0]  %s531, 128, %s534, %s523
        $region84: #{tpu_custom_call.1} parent=79 // pred_fallthru
          _
      $region80: #{tpu_custom_call.1} parent=5 // pred_fallthru
        _
      %p537 = scmp.le.s32.totalorder 1, %s30
      %p538 = scmp.lt.s32.totalorder %s30, 3
      %p539 = pnand %p537, %p538
      %p540 = pneg %p539
      // Predicated region
      $region85: #{tpu_custom_call.1} parent=5 // pred_check
        _
      $region86: #{tpu_custom_call.1} parent=5 // pred_check_branch
        %542 = sbr.rel (%p539) target = $region88
      $region87: #{tpu_custom_call.1} parent=5 // pred_region
        %s543 = ssub.s32 %s30, 1
        %s544 = sand.u32 %s55, 1
        %s545 = scalar_lea.sflag [#allocation5], %s544
        %s546 = sand.u32 %s55, 1
        %s547 = smul.addr %s546, 8
        %s548 = scalar_lea.vmem [#allocation4], %s547
        // Predicated region
        $region89: #{tpu_custom_call.1} parent=87 // pred_check
          %p549 = pneg %p68
        $region90: #{tpu_custom_call.1} parent=87 // pred_check_branch
          %551 = sbr.rel (%p549) target = $region92
        $region91: #{tpu_custom_call.1} parent=87 // pred_region
          %552 = dma.done %s545, 128
        $region92: #{tpu_custom_call.1} parent=87 // pred_fallthru
          _
        // Predicated region
        $region93: #{tpu_custom_call.1} parent=87 // pred_check
          %p553 = pneg %p215
        $region94: #{tpu_custom_call.1} parent=87 // pred_check_branch
          %555 = sbr.rel (%p553) target = $region96
        $region95: #{tpu_custom_call.1} parent=87 // pred_region
          %556 = dma.done [#allocation8], 512
        $region96: #{tpu_custom_call.1} parent=87 // pred_fallthru
          _
        // Predicated region
        $region97: #{tpu_custom_call.1} parent=87 // pred_check
          %p557 = pneg %p257
        $region98: #{tpu_custom_call.1} parent=87 // pred_check_branch
          %559 = sbr.rel (%p557) target = $region100
        $region99: #{tpu_custom_call.1} parent=87 // pred_region
          %560 = dma.done [#allocation8], 512
        $region100: #{tpu_custom_call.1} parent=87 // pred_fallthru
          _
        %s561 = sand.u32 %s55, 1
        %s562 = scalar_lea.sflag [#allocation5], %s561
        %s563 = sand.u32 %s55, 1
        %s564 = smul.addr %s563, 8
        %s565 = scalar_lea.vmem [#allocation4], %s564
        %p566 = pneg %p68
        %p567 = pneg %p65
        %p568 = pneg %p89
        %p569 = pneg %p86
        %p570 = pneg %p110
        %p571 = pneg %p107
        %p572 = pneg %p131
        %p573 = pneg %p128
        %p574 = pneg %p152
        %p575 = pneg %p149
        %p576 = pneg %p173
        %p577 = pneg %p170
        %p578 = pneg %p194
        %p579 = pneg %p191
        %p580 = pneg %p215
        %p581 = pneg %p212
        %p582 = pneg %p236
        %p583 = pneg %p233
        %p584 = pneg %p257
        %p585 = pneg %p254
        %p586 = pneg %p278
        %p587 = pneg %p275
        %p588 = pneg %p299
        %p589 = pneg %p296
        %p590 = pneg %p320
        %p591 = pneg %p317
        %p592 = pneg %p341
        %p593 = pneg %p338
        %p594 = pneg %p362
        %p595 = pneg %p359
        %p596 = pneg %p383
        %p597 = pneg %p380
        %p598 = pneg %p404
        %p599 = pneg %p401
        %p600 = pneg %p432
        %p601 = pneg %p429
        %s602 = sand.u32 %s419, 1
        %s603 = scalar_lea.sflag [#allocation6], %s602
        %s604 = sand.u32 %s419, 1
        %s605 = smul.addr %s604, 8
        %s606 = scalar_lea.vmem [#allocation10], %s605
        %p607 = scmp.eq.s32.totalorder %s40, 0
        // Predicated region
        $region101: #{tpu_custom_call.1} parent=87 // pred_check
          %p608 = pneg %p607
        $region102: #{tpu_custom_call.1} parent=87 // pred_check_branch
          %610 = sbr.rel (%p608) target = $region104
        $region103: #{tpu_custom_call.1} parent=87 // pred_region
          %v611 = vld [vmem:[%s548] sm:$0xff]
          %v612 = vld [vmem:[%s3] sm:$0xff]
          %v613 = vld [vmem:[%s3 + $0x8] sm:$0xff]
          %v614 = vld [vmem:[%s3 + $0x10] sm:$0xff]
          %v615 = vld [vmem:[%s3 + $0x18] sm:$0xff]
          %v616 = vld [vmem:[%s4] sm:$0x1]
          %v618 = vlaneseq
          %v619 = vshrl.u32 %v618, 7
          %v620 = vsub.s32 0, %v619
          %v621 = vrot.slane %v616, %v620
          %vm623 = vcmask 261120
          %v625 = vsel %vm623, %v611, 0
          %627 = vmatprep.subr.mxu0 0.0
          %628 = vmatpush1.msra.mxu0 %v612
          %629 = vmatprep.subr.mxu0 0.0
          %630 = vmatpush1.msra.mxu0 %v613
          %631 = vmatprep.subr.mxu0 0.0
          %632 = vmatpush1.msra.mxu0 %v614
          %633 = vmatprep.subr.mxu0 0.0
          %634 = vmatpush1.msra.mxu0 %v615
          %635 = vmatprep.subr.mxu0 0.0
          %636 = vmatpush1.msra.mxu0 0.0
          %637 = vmatprep.subr.mxu0 0.0
          %638 = vmatpush1.msra.mxu0 0.0
          %639 = vmatprep.subr.mxu0 0.0
          %640 = vmatpush1.msra.mxu0 0.0
          %641 = vmatprep.subr.mxu0 0.0
          %642 = vmatpush1.msra.mxu0 0.0
          %643 = vmatprep.subr.mxu0 0.0
          %644 = vmatpush1.msra.mxu0 0.0
          %645 = vmatprep.subr.mxu0 0.0
          %646 = vmatpush1.msra.mxu0 0.0
          %647 = vmatprep.subr.mxu0 0.0
          %648 = vmatpush1.msra.mxu0 0.0
          %649 = vmatprep.subr.mxu0 0.0
          %650 = vmatpush1.msra.mxu0 0.0
          %651 = vmatprep.subr.mxu0 0.0
          %652 = vmatpush1.msra.mxu0 0.0
          %653 = vmatprep.subr.mxu0 0.0
          %654 = vmatpush1.msra.mxu0 0.0
          %655 = vmatprep.subr.mxu0 0.0
          %656 = vmatpush1.msra.mxu0 0.0
          %657 = vmatprep.subr.mxu0 0.0
          %658 = vmatpush1.msra.mxu0 0.0
          %659 = vmatprep.subr.mxu0 0.0
          %660 = vmatpush1.msra.mxu0 0.0
          %661 = vmatprep.subr.mxu0 0.0
          %662 = vmatpush1.msra.mxu0 0.0
          %663 = vmatprep.subr.mxu0 0.0
          %664 = vmatpush1.msra.mxu0 0.0
          %665 = vmatprep.subr.mxu0 0.0
          %666 = vmatpush1.msra.mxu0 0.0
          %667 = vmatprep.subr.mxu0 0.0
          %668 = vmatpush1.msra.mxu0 0.0
          %669 = vmatprep.subr.mxu0 0.0
          %670 = vmatpush1.msra.mxu0 0.0
          %671 = vmatprep.subr.mxu0 0.0
          %672 = vmatpush1.msra.mxu0 0.0
          %673 = vmatprep.subr.mxu0 0.0
          %674 = vmatpush1.msra.mxu0 0.0
          %675 = vmatprep.subr.mxu0 0.0
          %676 = vmatpush1.msra.mxu0 0.0
          %677 = vmatprep.subr.mxu0 0.0
          %678 = vmatpush1.msra.mxu0 0.0
          %679 = vmatprep.subr.mxu0 0.0
          %680 = vmatpush1.msra.mxu0 0.0
          %681 = vmatprep.subr.mxu0 0.0
          %682 = vmatpush1.msra.mxu0 0.0
          %683 = vmatprep.subr.mxu0 0.0
          %684 = vmatpush1.msra.mxu0 0.0
          %685 = vmatprep.subr.mxu0 0.0
          %686 = vmatpush1.msra.mxu0 0.0
          %687 = vmatprep.subr.mxu0 0.0
          %688 = vmatpush1.msra.mxu0 0.0
          %689 = vmatprep.subr.mxu0 0.0
          %690 = vmatpush1.msra.mxu0 0.0
          %691 = vmatprep.mubr.f32.mxu0 0.0
          %692 = vmatmul.mubr.f32.gmra.mrb[0].mxu0 %v625
          %v693 = vpop.f32.mrb[0].mxu0
          %v694 = vadd.f32 %v621, %v693
          %v695 = vpop.f32.mrb[0].mxu0
          %696 = vdwg.mxu0
          %v697 = vld [vmem:[%s5] sm:$0xff]
          %v698 = vld [vmem:[%s5 + $0x8] sm:$0xff]
          %v699 = vld [vmem:[%s5 + $0x10] sm:$0xff]
          %v700 = vld [vmem:[%s5 + $0x18] sm:$0xff]
          %v701 = vld [vmem:[%s6] sm:$0x1]
          %v703 = vlaneseq
          %v704 = vshrl.u32 %v703, 7
          %v705 = vsub.s32 0, %v704
          %v706 = vrot.slane %v701, %v705
          %708 = vmatprep.subr.mxu0 0.0
          %709 = vmatpush1.msra.mxu0 %v697
          %710 = vmatprep.subr.mxu0 0.0
          %711 = vmatpush1.msra.mxu0 %v698
          %712 = vmatprep.subr.mxu0 0.0
          %713 = vmatpush1.msra.mxu0 %v699
          %714 = vmatprep.subr.mxu0 0.0
          %715 = vmatpush1.msra.mxu0 %v700
          %716 = vmatprep.subr.mxu0 0.0
          %717 = vmatpush1.msra.mxu0 0.0
          %718 = vmatprep.subr.mxu0 0.0
          %719 = vmatpush1.msra.mxu0 0.0
          %720 = vmatprep.subr.mxu0 0.0
          %721 = vmatpush1.msra.mxu0 0.0
          %722 = vmatprep.subr.mxu0 0.0
          %723 = vmatpush1.msra.mxu0 0.0
          %724 = vmatprep.subr.mxu0 0.0
          %725 = vmatpush1.msra.mxu0 0.0
          %726 = vmatprep.subr.mxu0 0.0
          %727 = vmatpush1.msra.mxu0 0.0
          %728 = vmatprep.subr.mxu0 0.0
          %729 = vmatpush1.msra.mxu0 0.0
          %730 = vmatprep.subr.mxu0 0.0
          %731 = vmatpush1.msra.mxu0 0.0
          %732 = vmatprep.subr.mxu0 0.0
          %733 = vmatpush1.msra.mxu0 0.0
          %734 = vmatprep.subr.mxu0 0.0
          %735 = vmatpush1.msra.mxu0 0.0
          %736 = vmatprep.subr.mxu0 0.0
          %737 = vmatpush1.msra.mxu0 0.0
          %738 = vmatprep.subr.mxu0 0.0
          %739 = vmatpush1.msra.mxu0 0.0
          %740 = vmatprep.subr.mxu0 0.0
          %741 = vmatpush1.msra.mxu0 0.0
          %742 = vmatprep.subr.mxu0 0.0
          %743 = vmatpush1.msra.mxu0 0.0
          %744 = vmatprep.subr.mxu0 0.0
          %745 = vmatpush1.msra.mxu0 0.0
          %746 = vmatprep.subr.mxu0 0.0
          %747 = vmatpush1.msra.mxu0 0.0
          %748 = vmatprep.subr.mxu0 0.0
          %749 = vmatpush1.msra.mxu0 0.0
          %750 = vmatprep.subr.mxu0 0.0
          %751 = vmatpush1.msra.mxu0 0.0
          %752 = vmatprep.subr.mxu0 0.0
          %753 = vmatpush1.msra.mxu0 0.0
          %754 = vmatprep.subr.mxu0 0.0
          %755 = vmatpush1.msra.mxu0 0.0
          %756 = vmatprep.subr.mxu0 0.0
          %757 = vmatpush1.msra.mxu0 0.0
          %758 = vmatprep.subr.mxu0 0.0
          %759 = vmatpush1.msra.mxu0 0.0
          %760 = vmatprep.subr.mxu0 0.0
          %761 = vmatpush1.msra.mxu0 0.0
          %762 = vmatprep.subr.mxu0 0.0
          %763 = vmatpush1.msra.mxu0 0.0
          %764 = vmatprep.subr.mxu0 0.0
          %765 = vmatpush1.msra.mxu0 0.0
          %766 = vmatprep.subr.mxu0 0.0
          %767 = vmatpush1.msra.mxu0 0.0
          %768 = vmatprep.subr.mxu0 0.0
          %769 = vmatpush1.msra.mxu0 0.0
          %770 = vmatprep.subr.mxu0 0.0
          %771 = vmatpush1.msra.mxu0 0.0
          %772 = vmatprep.mubr.f32.mxu0 0.0
          %773 = vmatmul.mubr.f32.gmra.mrb[0].mxu0 %v625
          %v774 = vpop.f32.mrb[0].mxu0
          %v775 = vadd.f32 %v706, %v774
          %v776 = vpop.f32.mrb[0].mxu0
          %777 = vdwg.mxu0
          %779 = vrot.lane.b32.xlu0 %v694, 120
          %v780 = vpop.permute.xlu0 %779
          %782 = vrot.lane.b32.xlu0 %v694, 112
          %v783 = vpop.permute.xlu0 %782
          %785 = vrot.lane.b32.xlu0 %v694, 104
          %v786 = vpop.permute.xlu0 %785
          %v788 = vcombine.low %v694, %v783
          %v789 = vcombine.high %v694, %v783
          %v791 = vunpack.c.l.s4 1983009808
          %v792 = vunpack.c.0.s8 %v791
          %v793 = vlaneseq
          %v794 = vshrl.u32 %v793, 7
          %v795 = vsub.s32 %v792, %v794
          %v796 = vrot.slane %v788, %v795
          %v798 = vunpack.c.l.s4 1983009808
          %v799 = vunpack.c.0.s8 %v798
          %v800 = vlaneseq
          %v801 = vshrl.u32 %v800, 7
          %v802 = vsub.s32 %v799, %v801
          %v803 = vrot.slane %v789, %v802
          %v804 = vcombine.low %v780, %v786
          %v805 = vcombine.high %v780, %v786
          %v807 = vunpack.c.l.s4 1983009808
          %v808 = vunpack.c.0.s8 %v807
          %v809 = vlaneseq
          %v810 = vshrl.u32 %v809, 7
          %v811 = vsub.s32 %v808, %v810
          %v812 = vrot.slane %v804, %v811
          %v814 = vunpack.c.l.s4 1983009808
          %v815 = vunpack.c.0.s8 %v814
          %v816 = vlaneseq
          %v817 = vshrl.u32 %v816, 7
          %v818 = vsub.s32 %v815, %v817
          %v819 = vrot.slane %v805, %v818
          %v820 = vcombine.low %v796, %v812
          %v821 = vcombine.high %v796, %v812
          %v823 = vunpack.c.l.s4 1934713408
          %v824 = vunpack.c.0.s8 %v823
          %v825 = vlaneseq
          %v826 = vshrl.u32 %v825, 7
          %v827 = vsub.s32 %v824, %v826
          %v828 = vrot.slane %v820, %v827
          %v830 = vunpack.c.l.s4 1934713408
          %v831 = vunpack.c.0.s8 %v830
          %v832 = vlaneseq
          %v833 = vshrl.u32 %v832, 7
          %v834 = vsub.s32 %v831, %v833
          %v835 = vrot.slane %v821, %v834
          %v836 = vcombine.low %v803, %v819
          %v837 = vcombine.high %v803, %v819
          %v839 = vunpack.c.l.s4 1934713408
          %v840 = vunpack.c.0.s8 %v839
          %v841 = vlaneseq
          %v842 = vshrl.u32 %v841, 7
          %v843 = vsub.s32 %v840, %v842
          %v844 = vrot.slane %v836, %v843
          %v846 = vunpack.c.l.s4 1934713408
          %v847 = vunpack.c.0.s8 %v846
          %v848 = vlaneseq
          %v849 = vshrl.u32 %v848, 7
          %v850 = vsub.s32 %v847, %v849
          %v851 = vrot.slane %v837, %v850
          %v852 = vcombine.high %v828, 0.0
          %v853 = vcombine.high %v835, 0.0
          %v854 = vcombine.high %v844, 0.0
          %v855 = vcombine.high %v851, 0.0
          %v856 = vcombine.low %v828, %v835
          %v858 = vunpack.c.l.s4 1983009808
          %v859 = vunpack.c.0.s8 %v858
          %v860 = vlaneseq
          %v861 = vshrl.u32 %v860, 7
          %v862 = vsub.s32 %v859, %v861
          %v863 = vrot.slane %v856, %v862
          %v864 = vcombine.low %v852, %v853
          %v866 = vunpack.c.l.s4 1983009808
          %v867 = vunpack.c.0.s8 %v866
          %v868 = vlaneseq
          %v869 = vshrl.u32 %v868, 7
          %v870 = vsub.s32 %v867, %v869
          %v871 = vrot.slane %v864, %v870
          %v872 = vcombine.low %v844, %v851
          %v874 = vunpack.c.l.s4 1983009808
          %v875 = vunpack.c.0.s8 %v874
          %v876 = vlaneseq
          %v877 = vshrl.u32 %v876, 7
          %v878 = vsub.s32 %v875, %v877
          %v879 = vrot.slane %v872, %v878
          %v880 = vcombine.low %v854, %v855
          %v882 = vunpack.c.l.s4 1983009808
          %v883 = vunpack.c.0.s8 %v882
          %v884 = vlaneseq
          %v885 = vshrl.u32 %v884, 7
          %v886 = vsub.s32 %v883, %v885
          %v887 = vrot.slane %v880, %v886
          %v888 = vcombine.low %v863, %v871
          %v889 = vcombine.high %v863, %v871
          %v891 = vunpack.c.l.s4 1934713408
          %v892 = vunpack.c.0.s8 %v891
          %v893 = vlaneseq
          %v894 = vshrl.u32 %v893, 7
          %v895 = vsub.s32 %v892, %v894
          %v896 = vrot.slane %v888, %v895
          %v898 = vunpack.c.l.s4 1934713408
          %v899 = vunpack.c.0.s8 %v898
          %v900 = vlaneseq
          %v901 = vshrl.u32 %v900, 7
          %v902 = vsub.s32 %v899, %v901
          %v903 = vrot.slane %v889, %v902
          %v904 = vcombine.low %v879, %v887
          %v905 = vcombine.high %v879, %v887
          %v907 = vunpack.c.l.s4 1934713408
          %v908 = vunpack.c.0.s8 %v907
          %v909 = vlaneseq
          %v910 = vshrl.u32 %v909, 7
          %v911 = vsub.s32 %v908, %v910
          %v912 = vrot.slane %v904, %v911
          %v914 = vunpack.c.l.s4 1934713408
          %v915 = vunpack.c.0.s8 %v914
          %v916 = vlaneseq
          %v917 = vshrl.u32 %v916, 7
          %v918 = vsub.s32 %v915, %v917
          %v919 = vrot.slane %v905, %v918
          %v920 = vcombine.low %v896, %v912
          %v921 = vcombine.high %v896, %v912
          %v922 = vcombine.low %v903, %v919
          %v923 = vcombine.high %v903, %v919
          %vm924 = vcmask 64512
          %925 = vst.msk [vmem:[#allocation2] sm:$0xff] %vm924, %v920
          %926 = vst.msk [vmem:[#allocation2 + $0x8] sm:$0xff] %vm924, %v921
          %927 = vst.msk [vmem:[#allocation2 + $0x10] sm:$0xff] %vm924, %v922
          %928 = vst.msk [vmem:[#allocation2 + $0x18] sm:$0xff] %vm924, %v923
          %930 = vrot.lane.b32.xlu0 %v775, 120
          %v931 = vpop.permute.xlu0 %930
          %933 = vrot.lane.b32.xlu0 %v775, 112
          %v934 = vpop.permute.xlu0 %933
          %936 = vrot.lane.b32.xlu0 %v775, 104
          %v937 = vpop.permute.xlu0 %936
          %v939 = vcombine.low %v775, %v934
          %v940 = vcombine.high %v775, %v934
          %v942 = vunpack.c.l.s4 1983009808
          %v943 = vunpack.c.0.s8 %v942
          %v944 = vlaneseq
          %v945 = vshrl.u32 %v944, 7
          %v946 = vsub.s32 %v943, %v945
          %v947 = vrot.slane %v939, %v946
          %v949 = vunpack.c.l.s4 1983009808
          %v950 = vunpack.c.0.s8 %v949
          %v951 = vlaneseq
          %v952 = vshrl.u32 %v951, 7
          %v953 = vsub.s32 %v950, %v952
          %v954 = vrot.slane %v940, %v953
          %v955 = vcombine.low %v931, %v937
          %v956 = vcombine.high %v931, %v937
          %v958 = vunpack.c.l.s4 1983009808
          %v959 = vunpack.c.0.s8 %v958
          %v960 = vlaneseq
          %v961 = vshrl.u32 %v960, 7
          %v962 = vsub.s32 %v959, %v961
          %v963 = vrot.slane %v955, %v962
          %v965 = vunpack.c.l.s4 1983009808
          %v966 = vunpack.c.0.s8 %v965
          %v967 = vlaneseq
          %v968 = vshrl.u32 %v967, 7
          %v969 = vsub.s32 %v966, %v968
          %v970 = vrot.slane %v956, %v969
          %v971 = vcombine.low %v947, %v963
          %v972 = vcombine.high %v947, %v963
          %v974 = vunpack.c.l.s4 1934713408
          %v975 = vunpack.c.0.s8 %v974
          %v976 = vlaneseq
          %v977 = vshrl.u32 %v976, 7
          %v978 = vsub.s32 %v975, %v977
          %v979 = vrot.slane %v971, %v978
          %v981 = vunpack.c.l.s4 1934713408
          %v982 = vunpack.c.0.s8 %v981
          %v983 = vlaneseq
          %v984 = vshrl.u32 %v983, 7
          %v985 = vsub.s32 %v982, %v984
          %v986 = vrot.slane %v972, %v985
          %v987 = vcombine.low %v954, %v970
          %v988 = vcombine.high %v954, %v970
          %v990 = vunpack.c.l.s4 1934713408
          %v991 = vunpack.c.0.s8 %v990
          %v992 = vlaneseq
          %v993 = vshrl.u32 %v992, 7
          %v994 = vsub.s32 %v991, %v993
          %v995 = vrot.slane %v987, %v994
          %v997 = vunpack.c.l.s4 1934713408
          %v998 = vunpack.c.0.s8 %v997
          %v999 = vlaneseq
          %v1000 = vshrl.u32 %v999, 7
          %v1001 = vsub.s32 %v998, %v1000
          %v1002 = vrot.slane %v988, %v1001
          %v1003 = vcombine.high %v979, 0.0
          %v1004 = vcombine.high %v986, 0.0
          %v1005 = vcombine.high %v995, 0.0
          %v1006 = vcombine.high %v1002, 0.0
          %v1007 = vcombine.low %v979, %v986
          %v1009 = vunpack.c.l.s4 1983009808
          %v1010 = vunpack.c.0.s8 %v1009
          %v1011 = vlaneseq
          %v1012 = vshrl.u32 %v1011, 7
          %v1013 = vsub.s32 %v1010, %v1012
          %v1014 = vrot.slane %v1007, %v1013
          %v1015 = vcombine.low %v1003, %v1004
          %v1017 = vunpack.c.l.s4 1983009808
          %v1018 = vunpack.c.0.s8 %v1017
          %v1019 = vlaneseq
          %v1020 = vshrl.u32 %v1019, 7
          %v1021 = vsub.s32 %v1018, %v1020
          %v1022 = vrot.slane %v1015, %v1021
          %v1023 = vcombine.low %v995, %v1002
          %v1025 = vunpack.c.l.s4 1983009808
          %v1026 = vunpack.c.0.s8 %v1025
          %v1027 = vlaneseq
          %v1028 = vshrl.u32 %v1027, 7
          %v1029 = vsub.s32 %v1026, %v1028
          %v1030 = vrot.slane %v1023, %v1029
          %v1031 = vcombine.low %v1005, %v1006
          %v1033 = vunpack.c.l.s4 1983009808
          %v1034 = vunpack.c.0.s8 %v1033
          %v1035 = vlaneseq
          %v1036 = vshrl.u32 %v1035, 7
          %v1037 = vsub.s32 %v1034, %v1036
          %v1038 = vrot.slane %v1031, %v1037
          %v1039 = vcombine.low %v1014, %v1022
          %v1040 = vcombine.high %v1014, %v1022
          %v1042 = vunpack.c.l.s4 1934713408
          %v1043 = vunpack.c.0.s8 %v1042
          %v1044 = vlaneseq
          %v1045 = vshrl.u32 %v1044, 7
          %v1046 = vsub.s32 %v1043, %v1045
          %v1047 = vrot.slane %v1039, %v1046
          %v1049 = vunpack.c.l.s4 1934713408
          %v1050 = vunpack.c.0.s8 %v1049
          %v1051 = vlaneseq
          %v1052 = vshrl.u32 %v1051, 7
          %v1053 = vsub.s32 %v1050, %v1052
          %v1054 = vrot.slane %v1040, %v1053
          %v1055 = vcombine.low %v1030, %v1038
          %v1056 = vcombine.high %v1030, %v1038
          %v1058 = vunpack.c.l.s4 1934713408
          %v1059 = vunpack.c.0.s8 %v1058
          %v1060 = vlaneseq
          %v1061 = vshrl.u32 %v1060, 7
          %v1062 = vsub.s32 %v1059, %v1061
          %v1063 = vrot.slane %v1055, %v1062
          %v1065 = vunpack.c.l.s4 1934713408
          %v1066 = vunpack.c.0.s8 %v1065
          %v1067 = vlaneseq
          %v1068 = vshrl.u32 %v1067, 7
          %v1069 = vsub.s32 %v1066, %v1068
          %v1070 = vrot.slane %v1056, %v1069
          %v1071 = vcombine.low %v1047, %v1063
          %v1072 = vcombine.high %v1047, %v1063
          %v1073 = vcombine.low %v1054, %v1070
          %v1074 = vcombine.high %v1054, %v1070
          %1075 = vst.msk [vmem:[#allocation3] sm:$0xff] %vm924, %v1071
          %1076 = vst.msk [vmem:[#allocation3 + $0x8] sm:$0xff] %vm924, %v1072
          %1077 = vst.msk [vmem:[#allocation3 + $0x10] sm:$0xff] %vm924, %v1073
          %1078 = vst.msk [vmem:[#allocation3 + $0x18] sm:$0xff] %vm924, %v1074
        $region104: #{tpu_custom_call.1} parent=87 // pred_fallthru
          _
        %s1079 = smul.u32 %s40, 8
        %s1080 = scalar_lea.vmem %s548, %s1079 [#allocation4]
        %v1081 = vld [vmem:[%s1080] sm:$0xff]
        %v1082 = vld [vmem:[%s1] sm:$0xff]
        %v1083 = vld [vmem:[%s1 + $0x8] sm:$0xff]
        %v1084 = vld [vmem:[%s1 + $0x10] sm:$0xff]
        %v1085 = vld [vmem:[%s1 + $0x18] sm:$0xff]
        %v1086 = vld [vmem:[%s2] sm:$0x1]
        %v1088 = vlaneseq
        %v1089 = vshrl.u32 %v1088, 7
        %v1090 = vsub.s32 0, %v1089
        %v1091 = vrot.slane %v1086, %v1090
        %vm1093 = vcmask 261120
        %v1095 = vsel %vm1093, %v1081, 0
        %1097 = vmatprep.subr.mxu0 0.0
        %1098 = vmatpush1.msra.mxu0 %v1082
        %1099 = vmatprep.subr.mxu0 0.0
        %1100 = vmatpush1.msra.mxu0 %v1083
        %1101 = vmatprep.subr.mxu0 0.0
        %1102 = vmatpush1.msra.mxu0 %v1084
        %1103 = vmatprep.subr.mxu0 0.0
        %1104 = vmatpush1.msra.mxu0 %v1085
        %1105 = vmatprep.subr.mxu0 0.0
        %1106 = vmatpush1.msra.mxu0 0.0
        %1107 = vmatprep.subr.mxu0 0.0
        %1108 = vmatpush1.msra.mxu0 0.0
        %1109 = vmatprep.subr.mxu0 0.0
        %1110 = vmatpush1.msra.mxu0 0.0
        %1111 = vmatprep.subr.mxu0 0.0
        %1112 = vmatpush1.msra.mxu0 0.0
        %1113 = vmatprep.subr.mxu0 0.0
        %1114 = vmatpush1.msra.mxu0 0.0
        %1115 = vmatprep.subr.mxu0 0.0
        %1116 = vmatpush1.msra.mxu0 0.0
        %1117 = vmatprep.subr.mxu0 0.0
        %1118 = vmatpush1.msra.mxu0 0.0
        %1119 = vmatprep.subr.mxu0 0.0
        %1120 = vmatpush1.msra.mxu0 0.0
        %1121 = vmatprep.subr.mxu0 0.0
        %1122 = vmatpush1.msra.mxu0 0.0
        %1123 = vmatprep.subr.mxu0 0.0
        %1124 = vmatpush1.msra.mxu0 0.0
        %1125 = vmatprep.subr.mxu0 0.0
        %1126 = vmatpush1.msra.mxu0 0.0
        %1127 = vmatprep.subr.mxu0 0.0
        %1128 = vmatpush1.msra.mxu0 0.0
        %1129 = vmatprep.subr.mxu0 0.0
        %1130 = vmatpush1.msra.mxu0 0.0
        %1131 = vmatprep.subr.mxu0 0.0
        %1132 = vmatpush1.msra.mxu0 0.0
        %1133 = vmatprep.subr.mxu0 0.0
        %1134 = vmatpush1.msra.mxu0 0.0
        %1135 = vmatprep.subr.mxu0 0.0
        %1136 = vmatpush1.msra.mxu0 0.0
        %1137 = vmatprep.subr.mxu0 0.0
        %1138 = vmatpush1.msra.mxu0 0.0
        %1139 = vmatprep.subr.mxu0 0.0
        %1140 = vmatpush1.msra.mxu0 0.0
        %1141 = vmatprep.subr.mxu0 0.0
        %1142 = vmatpush1.msra.mxu0 0.0
        %1143 = vmatprep.subr.mxu0 0.0
        %1144 = vmatpush1.msra.mxu0 0.0
        %1145 = vmatprep.subr.mxu0 0.0
        %1146 = vmatpush1.msra.mxu0 0.0
        %1147 = vmatprep.subr.mxu0 0.0
        %1148 = vmatpush1.msra.mxu0 0.0
        %1149 = vmatprep.subr.mxu0 0.0
        %1150 = vmatpush1.msra.mxu0 0.0
        %1151 = vmatprep.subr.mxu0 0.0
        %1152 = vmatpush1.msra.mxu0 0.0
        %1153 = vmatprep.subr.mxu0 0.0
        %1154 = vmatpush1.msra.mxu0 0.0
        %1155 = vmatprep.subr.mxu0 0.0
        %1156 = vmatpush1.msra.mxu0 0.0
        %1157 = vmatprep.subr.mxu0 0.0
        %1158 = vmatpush1.msra.mxu0 0.0
        %1159 = vmatprep.subr.mxu0 0.0
        %1160 = vmatpush1.msra.mxu0 0.0
        %1161 = vmatprep.mubr.f32.mxu0 0.0
        %1162 = vmatmul.mubr.f32.gmra.mrb[0].mxu0 %v1095
        %v1163 = vpop.f32.mrb[0].mxu0
        %v1164 = vadd.f32 %v1091, %v1163
        %v1165 = vpop.f32.mrb[0].mxu0
        %1166 = vdwg.mxu0
        %v1167 = vmul.f32 %v1164, 0.35355338
        %1169 = vrot.lane.b32.xlu0 %v1167, 120
        %v1170 = vpop.permute.xlu0 %1169
        %1172 = vrot.lane.b32.xlu0 %v1167, 112
        %v1173 = vpop.permute.xlu0 %1172
        %1175 = vrot.lane.b32.xlu0 %v1167, 104
        %v1176 = vpop.permute.xlu0 %1175
        %v1178 = vcombine.low %v1167, %v1173
        %v1179 = vcombine.high %v1167, %v1173
        %v1181 = vunpack.c.l.s4 1983009808
        %v1182 = vunpack.c.0.s8 %v1181
        %v1183 = vlaneseq
        %v1184 = vshrl.u32 %v1183, 7
        %v1185 = vsub.s32 %v1182, %v1184
        %v1186 = vrot.slane %v1178, %v1185
        %v1188 = vunpack.c.l.s4 1983009808
        %v1189 = vunpack.c.0.s8 %v1188
        %v1190 = vlaneseq
        %v1191 = vshrl.u32 %v1190, 7
        %v1192 = vsub.s32 %v1189, %v1191
        %v1193 = vrot.slane %v1179, %v1192
        %v1194 = vcombine.low %v1170, %v1176
        %v1195 = vcombine.high %v1170, %v1176
        %v1197 = vunpack.c.l.s4 1983009808
        %v1198 = vunpack.c.0.s8 %v1197
        %v1199 = vlaneseq
        %v1200 = vshrl.u32 %v1199, 7
        %v1201 = vsub.s32 %v1198, %v1200
        %v1202 = vrot.slane %v1194, %v1201
        %v1204 = vunpack.c.l.s4 1983009808
        %v1205 = vunpack.c.0.s8 %v1204
        %v1206 = vlaneseq
        %v1207 = vshrl.u32 %v1206, 7
        %v1208 = vsub.s32 %v1205, %v1207
        %v1209 = vrot.slane %v1195, %v1208
        %v1210 = vcombine.low %v1186, %v1202
        %v1211 = vcombine.high %v1186, %v1202
        %v1213 = vunpack.c.l.s4 1934713408
        %v1214 = vunpack.c.0.s8 %v1213
        %v1215 = vlaneseq
        %v1216 = vshrl.u32 %v1215, 7
        %v1217 = vsub.s32 %v1214, %v1216
        %v1218 = vrot.slane %v1210, %v1217
        %v1220 = vunpack.c.l.s4 1934713408
        %v1221 = vunpack.c.0.s8 %v1220
        %v1222 = vlaneseq
        %v1223 = vshrl.u32 %v1222, 7
        %v1224 = vsub.s32 %v1221, %v1223
        %v1225 = vrot.slane %v1211, %v1224
        %v1226 = vcombine.low %v1193, %v1209
        %v1227 = vcombine.high %v1193, %v1209
        %v1229 = vunpack.c.l.s4 1934713408
        %v1230 = vunpack.c.0.s8 %v1229
        %v1231 = vlaneseq
        %v1232 = vshrl.u32 %v1231, 7
        %v1233 = vsub.s32 %v1230, %v1232
        %v1234 = vrot.slane %v1226, %v1233
        %v1236 = vunpack.c.l.s4 1934713408
        %v1237 = vunpack.c.0.s8 %v1236
        %v1238 = vlaneseq
        %v1239 = vshrl.u32 %v1238, 7
        %v1240 = vsub.s32 %v1237, %v1239
        %v1241 = vrot.slane %v1227, %v1240
        %v1242 = vcombine.high %v1218, 0.0
        %v1243 = vcombine.high %v1225, 0.0
        %v1244 = vcombine.high %v1234, 0.0
        %v1245 = vcombine.high %v1241, 0.0
        %v1246 = vcombine.low %v1218, %v1225
        %v1248 = vunpack.c.l.s4 1983009808
        %v1249 = vunpack.c.0.s8 %v1248
        %v1250 = vlaneseq
        %v1251 = vshrl.u32 %v1250, 7
        %v1252 = vsub.s32 %v1249, %v1251
        %v1253 = vrot.slane %v1246, %v1252
        %v1254 = vcombine.low %v1242, %v1243
        %v1256 = vunpack.c.l.s4 1983009808
        %v1257 = vunpack.c.0.s8 %v1256
        %v1258 = vlaneseq
        %v1259 = vshrl.u32 %v1258, 7
        %v1260 = vsub.s32 %v1257, %v1259
        %v1261 = vrot.slane %v1254, %v1260
        %v1262 = vcombine.low %v1234, %v1241
        %v1264 = vunpack.c.l.s4 1983009808
        %v1265 = vunpack.c.0.s8 %v1264
        %v1266 = vlaneseq
        %v1267 = vshrl.u32 %v1266, 7
        %v1268 = vsub.s32 %v1265, %v1267
        %v1269 = vrot.slane %v1262, %v1268
        %v1270 = vcombine.low %v1244, %v1245
        %v1272 = vunpack.c.l.s4 1983009808
        %v1273 = vunpack.c.0.s8 %v1272
        %v1274 = vlaneseq
        %v1275 = vshrl.u32 %v1274, 7
        %v1276 = vsub.s32 %v1273, %v1275
        %v1277 = vrot.slane %v1270, %v1276
        %v1278 = vcombine.low %v1253, %v1261
        %v1279 = vcombine.high %v1253, %v1261
        %v1281 = vunpack.c.l.s4 1934713408
        %v1282 = vunpack.c.0.s8 %v1281
        %v1283 = vlaneseq
        %v1284 = vshrl.u32 %v1283, 7
        %v1285 = vsub.s32 %v1282, %v1284
        %v1286 = vrot.slane %v1278, %v1285
        %v1288 = vunpack.c.l.s4 1934713408
        %v1289 = vunpack.c.0.s8 %v1288
        %v1290 = vlaneseq
        %v1291 = vshrl.u32 %v1290, 7
        %v1292 = vsub.s32 %v1289, %v1291
        %v1293 = vrot.slane %v1279, %v1292
        %v1294 = vcombine.low %v1269, %v1277
        %v1295 = vcombine.high %v1269, %v1277
        %v1297 = vunpack.c.l.s4 1934713408
        %v1298 = vunpack.c.0.s8 %v1297
        %v1299 = vlaneseq
        %v1300 = vshrl.u32 %v1299, 7
        %v1301 = vsub.s32 %v1298, %v1300
        %v1302 = vrot.slane %v1294, %v1301
        %v1304 = vunpack.c.l.s4 1934713408
        %v1305 = vunpack.c.0.s8 %v1304
        %v1306 = vlaneseq
        %v1307 = vshrl.u32 %v1306, 7
        %v1308 = vsub.s32 %v1305, %v1307
        %v1309 = vrot.slane %v1295, %v1308
        %v1310 = vcombine.low %v1286, %v1302
        %v1311 = vcombine.high %v1286, %v1302
        %v1312 = vcombine.low %v1293, %v1309
        %v1313 = vcombine.high %v1293, %v1309
        %v1314 = vld [vmem:[#allocation2] sm:$0xff]
        %v1315 = vld [vmem:[#allocation2 + $0x8] sm:$0xff]
        %v1316 = vld [vmem:[#allocation2 + $0x10] sm:$0xff]
        %v1317 = vld [vmem:[#allocation2 + $0x18] sm:$0xff]
        %v1318 = vld [vmem:[#allocation3] sm:$0xff]
        %v1319 = vld [vmem:[#allocation3 + $0x8] sm:$0xff]
        %v1320 = vld [vmem:[#allocation3 + $0x10] sm:$0xff]
        %v1321 = vld [vmem:[#allocation3 + $0x18] sm:$0xff]
        %vm1322 = vcmask 64512
        %v1324 = vsel %vm1322, %v1310, 0
        %v1327 = vsel %vm1322, %v1314, 0
        %1329 = vmatprep.subr.mxu0 0.0
        %1330 = vmatpush1.xpose.msra.mxu0 %v1327
        %1331 = vmatprep.subr.mxu0 0.0
        %1332 = vmatpush1.xpose.msra.mxu0 0.0
        %1333 = vmatprep.subr.mxu0 0.0
        %1334 = vmatpush1.xpose.msra.mxu0 0.0
        %1335 = vmatprep.subr.mxu0 0.0
        %1336 = vmatpush1.xpose.msra.mxu0 0.0
        %1337 = vmatprep.subr.mxu0 0.0
        %1338 = vmatpush1.xpose.msra.mxu0 0.0
        %1339 = vmatprep.subr.mxu0 0.0
        %1340 = vmatpush1.xpose.msra.mxu0 0.0
        %1341 = vmatprep.subr.mxu0 0.0
        %1342 = vmatpush1.xpose.msra.mxu0 0.0
        %1343 = vmatprep.subr.mxu0 0.0
        %1344 = vmatpush1.xpose.msra.mxu0 0.0
        %1345 = vmatprep.subr.mxu0 0.0
        %1346 = vmatpush1.xpose.msra.mxu0 0.0
        %1347 = vmatprep.subr.mxu0 0.0
        %1348 = vmatpush1.xpose.msra.mxu0 0.0
        %1349 = vmatprep.subr.mxu0 0.0
        %1350 = vmatpush1.xpose.msra.mxu0 0.0
        %1351 = vmatprep.subr.mxu0 0.0
        %1352 = vmatpush1.xpose.msra.mxu0 0.0
        %1353 = vmatprep.subr.mxu0 0.0
        %1354 = vmatpush1.xpose.msra.mxu0 0.0
        %1355 = vmatprep.subr.mxu0 0.0
        %1356 = vmatpush1.xpose.msra.mxu0 0.0
        %1357 = vmatprep.subr.mxu0 0.0
        %1358 = vmatpush1.xpose.msra.mxu0 0.0
        %1359 = vmatprep.subr.mxu0 0.0
        %1360 = vmatpush1.xpose.msra.mxu0 0.0
        %1361 = vmatprep.subr.mxu0 0.0
        %1362 = vmatpush1.xpose.msra.mxu0 0.0
        %1363 = vmatprep.subr.mxu0 0.0
        %1364 = vmatpush1.xpose.msra.mxu0 0.0
        %1365 = vmatprep.subr.mxu0 0.0
        %1366 = vmatpush1.xpose.msra.mxu0 0.0
        %1367 = vmatprep.subr.mxu0 0.0
        %1368 = vmatpush1.xpose.msra.mxu0 0.0
        %1369 = vmatprep.subr.mxu0 0.0
        %1370 = vmatpush1.xpose.msra.mxu0 0.0
        %1371 = vmatprep.subr.mxu0 0.0
        %1372 = vmatpush1.xpose.msra.mxu0 0.0
        %1373 = vmatprep.subr.mxu0 0.0
        %1374 = vmatpush1.xpose.msra.mxu0 0.0
        %1375 = vmatprep.subr.mxu0 0.0
        %1376 = vmatpush1.xpose.msra.mxu0 0.0
        %1377 = vmatprep.subr.mxu0 0.0
        %1378 = vmatpush1.xpose.msra.mxu0 0.0
        %1379 = vmatprep.subr.mxu0 0.0
        %1380 = vmatpush1.xpose.msra.mxu0 0.0
        %1381 = vmatprep.subr.mxu0 0.0
        %1382 = vmatpush1.xpose.msra.mxu0 0.0
        %1383 = vmatprep.subr.mxu0 0.0
        %1384 = vmatpush1.xpose.msra.mxu0 0.0
        %1385 = vmatprep.subr.mxu0 0.0
        %1386 = vmatpush1.xpose.msra.mxu0 0.0
        %1387 = vmatprep.subr.mxu0 0.0
        %1388 = vmatpush1.xpose.msra.mxu0 0.0
        %1389 = vmatprep.subr.mxu0 0.0
        %1390 = vmatpush1.xpose.msra.mxu0 0.0
        %1391 = vmatprep.subr.mxu0 0.0
        %1392 = vmatpush1.xpose.msra.mxu0 0.0
        %1393 = vmatprep.mubr.f32.mxu0 0.0
        %1394 = vmatmul.mubr.f32.gmra.mrb[0].mxu0 %v1324
        %v1395 = vpop.f32.mrb[0].mxu0
        %v1396 = vadd.f32 0.0, %v1395
        %v1397 = vpop.f32.mrb[0].mxu0
        %1398 = vdwg.mxu0
        %v1400 = vsel %vm1322, %v1311, 0
        %v1403 = vsel %vm1322, %v1315, 0
        %1405 = vmatprep.subr.mxu0 0.0
        %1406 = vmatpush1.xpose.msra.mxu0 %v1403
        %1407 = vmatprep.subr.mxu0 0.0
        %1408 = vmatpush1.xpose.msra.mxu0 0.0
        %1409 = vmatprep.subr.mxu0 0.0
        %1410 = vmatpush1.xpose.msra.mxu0 0.0
        %1411 = vmatprep.subr.mxu0 0.0
        %1412 = vmatpush1.xpose.msra.mxu0 0.0
        %1413 = vmatprep.subr.mxu0 0.0
        %1414 = vmatpush1.xpose.msra.mxu0 0.0
        %1415 = vmatprep.subr.mxu0 0.0
        %1416 = vmatpush1.xpose.msra.mxu0 0.0
        %1417 = vmatprep.subr.mxu0 0.0
        %1418 = vmatpush1.xpose.msra.mxu0 0.0
        %1419 = vmatprep.subr.mxu0 0.0
        %1420 = vmatpush1.xpose.msra.mxu0 0.0
        %1421 = vmatprep.subr.mxu0 0.0
        %1422 = vmatpush1.xpose.msra.mxu0 0.0
        %1423 = vmatprep.subr.mxu0 0.0
        %1424 = vmatpush1.xpose.msra.mxu0 0.0
        %1425 = vmatprep.subr.mxu0 0.0
        %1426 = vmatpush1.xpose.msra.mxu0 0.0
        %1427 = vmatprep.subr.mxu0 0.0
        %1428 = vmatpush1.xpose.msra.mxu0 0.0
        %1429 = vmatprep.subr.mxu0 0.0
        %1430 = vmatpush1.xpose.msra.mxu0 0.0
        %1431 = vmatprep.subr.mxu0 0.0
        %1432 = vmatpush1.xpose.msra.mxu0 0.0
        %1433 = vmatprep.subr.mxu0 0.0
        %1434 = vmatpush1.xpose.msra.mxu0 0.0
        %1435 = vmatprep.subr.mxu0 0.0
        %1436 = vmatpush1.xpose.msra.mxu0 0.0
        %1437 = vmatprep.subr.mxu0 0.0
        %1438 = vmatpush1.xpose.msra.mxu0 0.0
        %1439 = vmatprep.subr.mxu0 0.0
        %1440 = vmatpush1.xpose.msra.mxu0 0.0
        %1441 = vmatprep.subr.mxu0 0.0
        %1442 = vmatpush1.xpose.msra.mxu0 0.0
        %1443 = vmatprep.subr.mxu0 0.0
        %1444 = vmatpush1.xpose.msra.mxu0 0.0
        %1445 = vmatprep.subr.mxu0 0.0
        %1446 = vmatpush1.xpose.msra.mxu0 0.0
        %1447 = vmatprep.subr.mxu0 0.0
        %1448 = vmatpush1.xpose.msra.mxu0 0.0
        %1449 = vmatprep.subr.mxu0 0.0
        %1450 = vmatpush1.xpose.msra.mxu0 0.0
        %1451 = vmatprep.subr.mxu0 0.0
        %1452 = vmatpush1.xpose.msra.mxu0 0.0
        %1453 = vmatprep.subr.mxu0 0.0
        %1454 = vmatpush1.xpose.msra.mxu0 0.0
        %1455 = vmatprep.subr.mxu0 0.0
        %1456 = vmatpush1.xpose.msra.mxu0 0.0
        %1457 = vmatprep.subr.mxu0 0.0
        %1458 = vmatpush1.xpose.msra.mxu0 0.0
        %1459 = vmatprep.subr.mxu0 0.0
        %1460 = vmatpush1.xpose.msra.mxu0 0.0
        %1461 = vmatprep.subr.mxu0 0.0
        %1462 = vmatpush1.xpose.msra.mxu0 0.0
        %1463 = vmatprep.subr.mxu0 0.0
        %1464 = vmatpush1.xpose.msra.mxu0 0.0
        %1465 = vmatprep.subr.mxu0 0.0
        %1466 = vmatpush1.xpose.msra.mxu0 0.0
        %1467 = vmatprep.subr.mxu0 0.0
        %1468 = vmatpush1.xpose.msra.mxu0 0.0
        %1469 = vmatprep.mubr.f32.mxu0 0.0
        %1470 = vmatmul.mubr.f32.gmra.mrb[0].mxu0 %v1400
        %v1471 = vpop.f32.mrb[0].mxu0
        %v1472 = vadd.f32 0.0, %v1471
        %v1473 = vpop.f32.mrb[0].mxu0
        %1474 = vdwg.mxu0
        %v1476 = vsel %vm1322, %v1312, 0
        %v1479 = vsel %vm1322, %v1316, 0
        %1481 = vmatprep.subr.mxu0 0.0
        %1482 = vmatpush1.xpose.msra.mxu0 %v1479
        %1483 = vmatprep.subr.mxu0 0.0
        %1484 = vmatpush1.xpose.msra.mxu0 0.0
        %1485 = vmatprep.subr.mxu0 0.0
        %1486 = vmatpush1.xpose.msra.mxu0 0.0
        %1487 = vmatprep.subr.mxu0 0.0
        %1488 = vmatpush1.xpose.msra.mxu0 0.0
        %1489 = vmatprep.subr.mxu0 0.0
        %1490 = vmatpush1.xpose.msra.mxu0 0.0
        %1491 = vmatprep.subr.mxu0 0.0
        %1492 = vmatpush1.xpose.msra.mxu0 0.0
        %1493 = vmatprep.subr.mxu0 0.0
        %1494 = vmatpush1.xpose.msra.mxu0 0.0
        %1495 = vmatprep.subr.mxu0 0.0
        %1496 = vmatpush1.xpose.msra.mxu0 0.0
        %1497 = vmatprep.subr.mxu0 0.0
        %1498 = vmatpush1.xpose.msra.mxu0 0.0
        %1499 = vmatprep.subr.mxu0 0.0
        %1500 = vmatpush1.xpose.msra.mxu0 0.0
        %1501 = vmatprep.subr.mxu0 0.0
        %1502 = vmatpush1.xpose.msra.mxu0 0.0
        %1503 = vmatprep.subr.mxu0 0.0
        %1504 = vmatpush1.xpose.msra.mxu0 0.0
        %1505 = vmatprep.subr.mxu0 0.0
        %1506 = vmatpush1.xpose.msra.mxu0 0.0
        %1507 = vmatprep.subr.mxu0 0.0
        %1508 = vmatpush1.xpose.msra.mxu0 0.0
        %1509 = vmatprep.subr.mxu0 0.0
        %1510 = vmatpush1.xpose.msra.mxu0 0.0
        %1511 = vmatprep.subr.mxu0 0.0
        %1512 = vmatpush1.xpose.msra.mxu0 0.0
        %1513 = vmatprep.subr.mxu0 0.0
        %1514 = vmatpush1.xpose.msra.mxu0 0.0
        %1515 = vmatprep.subr.mxu0 0.0
        %1516 = vmatpush1.xpose.msra.mxu0 0.0
        %1517 = vmatprep.subr.mxu0 0.0
        %1518 = vmatpush1.xpose.msra.mxu0 0.0
        %1519 = vmatprep.subr.mxu0 0.0
        %1520 = vmatpush1.xpose.msra.mxu0 0.0
        %1521 = vmatprep.subr.mxu0 0.0
        %1522 = vmatpush1.xpose.msra.mxu0 0.0
        %1523 = vmatprep.subr.mxu0 0.0
        %1524 = vmatpush1.xpose.msra.mxu0 0.0
        %1525 = vmatprep.subr.mxu0 0.0
        %1526 = vmatpush1.xpose.msra.mxu0 0.0
        %1527 = vmatprep.subr.mxu0 0.0
        %1528 = vmatpush1.xpose.msra.mxu0 0.0
        %1529 = vmatprep.subr.mxu0 0.0
        %1530 = vmatpush1.xpose.msra.mxu0 0.0
        %1531 = vmatprep.subr.mxu0 0.0
        %1532 = vmatpush1.xpose.msra.mxu0 0.0
        %1533 = vmatprep.subr.mxu0 0.0
        %1534 = vmatpush1.xpose.msra.mxu0 0.0
        %1535 = vmatprep.subr.mxu0 0.0
        %1536 = vmatpush1.xpose.msra.mxu0 0.0
        %1537 = vmatprep.subr.mxu0 0.0
        %1538 = vmatpush1.xpose.msra.mxu0 0.0
        %1539 = vmatprep.subr.mxu0 0.0
        %1540 = vmatpush1.xpose.msra.mxu0 0.0
        %1541 = vmatprep.subr.mxu0 0.0
        %1542 = vmatpush1.xpose.msra.mxu0 0.0
        %1543 = vmatprep.subr.mxu0 0.0
        %1544 = vmatpush1.xpose.msra.mxu0 0.0
        %1545 = vmatprep.mubr.f32.mxu0 0.0
        %1546 = vmatmul.mubr.f32.gmra.mrb[0].mxu0 %v1476
        %v1547 = vpop.f32.mrb[0].mxu0
        %v1548 = vadd.f32 0.0, %v1547
        %v1549 = vpop.f32.mrb[0].mxu0
        %1550 = vdwg.mxu0
        %v1552 = vsel %vm1322, %v1313, 0
        %v1555 = vsel %vm1322, %v1317, 0
        %1557 = vmatprep.subr.mxu0 0.0
        %1558 = vmatpush1.xpose.msra.mxu0 %v1555
        %1559 = vmatprep.subr.mxu0 0.0
        %1560 = vmatpush1.xpose.msra.mxu0 0.0
        %1561 = vmatprep.subr.mxu0 0.0
        %1562 = vmatpush1.xpose.msra.mxu0 0.0
        %1563 = vmatprep.subr.mxu0 0.0
        %1564 = vmatpush1.xpose.msra.mxu0 0.0
        %1565 = vmatprep.subr.mxu0 0.0
        %1566 = vmatpush1.xpose.msra.mxu0 0.0
        %1567 = vmatprep.subr.mxu0 0.0
        %1568 = vmatpush1.xpose.msra.mxu0 0.0
        %1569 = vmatprep.subr.mxu0 0.0
        %1570 = vmatpush1.xpose.msra.mxu0 0.0
        %1571 = vmatprep.subr.mxu0 0.0
        %1572 = vmatpush1.xpose.msra.mxu0 0.0
        %1573 = vmatprep.subr.mxu0 0.0
        %1574 = vmatpush1.xpose.msra.mxu0 0.0
        %1575 = vmatprep.subr.mxu0 0.0
        %1576 = vmatpush1.xpose.msra.mxu0 0.0
        %1577 = vmatprep.subr.mxu0 0.0
        %1578 = vmatpush1.xpose.msra.mxu0 0.0
        %1579 = vmatprep.subr.mxu0 0.0
        %1580 = vmatpush1.xpose.msra.mxu0 0.0
        %1581 = vmatprep.subr.mxu0 0.0
        %1582 = vmatpush1.xpose.msra.mxu0 0.0
        %1583 = vmatprep.subr.mxu0 0.0
        %1584 = vmatpush1.xpose.msra.mxu0 0.0
        %1585 = vmatprep.subr.mxu0 0.0
        %1586 = vmatpush1.xpose.msra.mxu0 0.0
        %1587 = vmatprep.subr.mxu0 0.0
        %1588 = vmatpush1.xpose.msra.mxu0 0.0
        %1589 = vmatprep.subr.mxu0 0.0
        %1590 = vmatpush1.xpose.msra.mxu0 0.0
        %1591 = vmatprep.subr.mxu0 0.0
        %1592 = vmatpush1.xpose.msra.mxu0 0.0
        %1593 = vmatprep.subr.mxu0 0.0
        %1594 = vmatpush1.xpose.msra.mxu0 0.0
        %1595 = vmatprep.subr.mxu0 0.0
        %1596 = vmatpush1.xpose.msra.mxu0 0.0
        %1597 = vmatprep.subr.mxu0 0.0
        %1598 = vmatpush1.xpose.msra.mxu0 0.0
        %1599 = vmatprep.subr.mxu0 0.0
        %1600 = vmatpush1.xpose.msra.mxu0 0.0
        %1601 = vmatprep.subr.mxu0 0.0
        %1602 = vmatpush1.xpose.msra.mxu0 0.0
        %1603 = vmatprep.subr.mxu0 0.0
        %1604 = vmatpush1.xpose.msra.mxu0 0.0
        %1605 = vmatprep.subr.mxu0 0.0
        %1606 = vmatpush1.xpose.msra.mxu0 0.0
        %1607 = vmatprep.subr.mxu0 0.0
        %1608 = vmatpush1.xpose.msra.mxu0 0.0
        %1609 = vmatprep.subr.mxu0 0.0
        %1610 = vmatpush1.xpose.msra.mxu0 0.0
        %1611 = vmatprep.subr.mxu0 0.0
        %1612 = vmatpush1.xpose.msra.mxu0 0.0
        %1613 = vmatprep.subr.mxu0 0.0
        %1614 = vmatpush1.xpose.msra.mxu0 0.0
        %1615 = vmatprep.subr.mxu0 0.0
        %1616 = vmatpush1.xpose.msra.mxu0 0.0
        %1617 = vmatprep.subr.mxu0 0.0
        %1618 = vmatpush1.xpose.msra.mxu0 0.0
        %1619 = vmatprep.subr.mxu0 0.0
        %1620 = vmatpush1.xpose.msra.mxu0 0.0
        %1621 = vmatprep.mubr.f32.mxu0 0.0
        %1622 = vmatmul.mubr.f32.gmra.mrb[0].mxu0 %v1552
        %v1623 = vpop.f32.mrb[0].mxu0
        %v1624 = vadd.f32 0.0, %v1623
        %v1625 = vpop.f32.mrb[0].mxu0
        %1626 = vdwg.mxu0
        %v1627 = vsel %vm1322, %v1396, -inf
        %1628 = vmax.xlane.f32.xlu0 %v1627
        %v1629 = vpop.xlane.xlu0 %1628
        %v1630 = vsel %vm1322, %v1472, -inf
        %1631 = vmax.xlane.f32.xlu0 %v1630
        %v1632 = vpop.xlane.xlu0 %1631
        %v1633 = vsel %vm1322, %v1548, -inf
        %1634 = vmax.xlane.f32.xlu0 %v1633
        %v1635 = vpop.xlane.xlu0 %1634
        %v1636 = vsel %vm1322, %v1624, -inf
        %1637 = vmax.xlane.f32.xlu0 %v1636
        %v1638 = vpop.xlane.xlu0 %1637
        %v1639 = vsub.f32 -inf, %v1629
        %v1640 = vsub.f32 -inf, %v1632
        %v1641 = vsub.f32 -inf, %v1635
        %v1642 = vsub.f32 -inf, %v1638
        %v1643 = vmul.f32 %v1639, 1.442695
        %v1644 = vpow.pop %v1643
        %v1645 = vmul.f32 %v1640, 1.442695
        %v1646 = vpow.pop %v1645
        %v1647 = vmul.f32 %v1641, 1.442695
        %v1648 = vpow.pop %v1647
        %v1649 = vmul.f32 %v1642, 1.442695
        %v1650 = vpow.pop %v1649
        %v1651 = vsub.f32 %v1396, %v1629
        %v1652 = vsub.f32 %v1472, %v1632
        %v1653 = vsub.f32 %v1548, %v1635
        %v1654 = vsub.f32 %v1624, %v1638
        %v1655 = vmul.f32 %v1651, 1.442695
        %v1656 = vpow.pop %v1655
        %v1657 = vmul.f32 %v1652, 1.442695
        %v1658 = vpow.pop %v1657
        %v1659 = vmul.f32 %v1653, 1.442695
        %v1660 = vpow.pop %v1659
        %v1661 = vmul.f32 %v1654, 1.442695
        %v1662 = vpow.pop %v1661
        %v1663 = vmul.f32 %v1644, 0.0
        %v1664 = vmul.f32 %v1646, 0.0
        %v1665 = vmul.f32 %v1648, 0.0
        %v1666 = vmul.f32 %v1650, 0.0
        %v1667 = vsel %vm1322, %v1656, 0.0
        %1668 = vadd.xlane.f32.xlu0 %v1667
        %v1669 = vpop.xlane.xlu0 %1668
        %v1670 = vsel %vm1322, %v1658, 0.0
        %1671 = vadd.xlane.f32.xlu0 %v1670
        %v1672 = vpop.xlane.xlu0 %1671
        %v1673 = vsel %vm1322, %v1660, 0.0
        %1674 = vadd.xlane.f32.xlu0 %v1673
        %v1675 = vpop.xlane.xlu0 %1674
        %v1676 = vsel %vm1322, %v1662, 0.0
        %1677 = vadd.xlane.f32.xlu0 %v1676
        %v1678 = vpop.xlane.xlu0 %1677
        %v1679 = vadd.f32 %v1663, %v1669
        %v1680 = vadd.f32 %v1664, %v1672
        %v1681 = vadd.f32 %v1665, %v1675
        %v1682 = vadd.f32 %v1666, %v1678
        %v1684 = vsel %vm1322, %v1656, 0
        %1686 = vmatprep.subr.mxu0 0.0
        %1687 = vmatpush1.msra.mxu0 %v1318
        %1688 = vmatprep.subr.mxu0 0.0
        %1689 = vmatpush1.msra.mxu0 0.0
        %1690 = vmatprep.subr.mxu0 0.0
        %1691 = vmatpush1.msra.mxu0 0.0
        %1692 = vmatprep.subr.mxu0 0.0
        %1693 = vmatpush1.msra.mxu0 0.0
        %1694 = vmatprep.subr.mxu0 0.0
        %1695 = vmatpush1.msra.mxu0 0.0
        %1696 = vmatprep.subr.mxu0 0.0
        %1697 = vmatpush1.msra.mxu0 0.0
        %1698 = vmatprep.subr.mxu0 0.0
        %1699 = vmatpush1.msra.mxu0 0.0
        %1700 = vmatprep.subr.mxu0 0.0
        %1701 = vmatpush1.msra.mxu0 0.0
        %1702 = vmatprep.subr.mxu0 0.0
        %1703 = vmatpush1.msra.mxu0 0.0
        %1704 = vmatprep.subr.mxu0 0.0
        %1705 = vmatpush1.msra.mxu0 0.0
        %1706 = vmatprep.subr.mxu0 0.0
        %1707 = vmatpush1.msra.mxu0 0.0
        %1708 = vmatprep.subr.mxu0 0.0
        %1709 = vmatpush1.msra.mxu0 0.0
        %1710 = vmatprep.subr.mxu0 0.0
        %1711 = vmatpush1.msra.mxu0 0.0
        %1712 = vmatprep.subr.mxu0 0.0
        %1713 = vmatpush1.msra.mxu0 0.0
        %1714 = vmatprep.subr.mxu0 0.0
        %1715 = vmatpush1.msra.mxu0 0.0
        %1716 = vmatprep.subr.mxu0 0.0
        %1717 = vmatpush1.msra.mxu0 0.0
        %1718 = vmatprep.subr.mxu0 0.0
        %1719 = vmatpush1.msra.mxu0 0.0
        %1720 = vmatprep.subr.mxu0 0.0
        %1721 = vmatpush1.msra.mxu0 0.0
        %1722 = vmatprep.subr.mxu0 0.0
        %1723 = vmatpush1.msra.mxu0 0.0
        %1724 = vmatprep.subr.mxu0 0.0
        %1725 = vmatpush1.msra.mxu0 0.0
        %1726 = vmatprep.subr.mxu0 0.0
        %1727 = vmatpush1.msra.mxu0 0.0
        %1728 = vmatprep.subr.mxu0 0.0
        %1729 = vmatpush1.msra.mxu0 0.0
        %1730 = vmatprep.subr.mxu0 0.0
        %1731 = vmatpush1.msra.mxu0 0.0
        %1732 = vmatprep.subr.mxu0 0.0
        %1733 = vmatpush1.msra.mxu0 0.0
        %1734 = vmatprep.subr.mxu0 0.0
        %1735 = vmatpush1.msra.mxu0 0.0
        %1736 = vmatprep.subr.mxu0 0.0
        %1737 = vmatpush1.msra.mxu0 0.0
        %1738 = vmatprep.subr.mxu0 0.0
        %1739 = vmatpush1.msra.mxu0 0.0
        %1740 = vmatprep.subr.mxu0 0.0
        %1741 = vmatpush1.msra.mxu0 0.0
        %1742 = vmatprep.subr.mxu0 0.0
        %1743 = vmatpush1.msra.mxu0 0.0
        %1744 = vmatprep.subr.mxu0 0.0
        %1745 = vmatpush1.msra.mxu0 0.0
        %1746 = vmatprep.subr.mxu0 0.0
        %1747 = vmatpush1.msra.mxu0 0.0
        %1748 = vmatprep.subr.mxu0 0.0
        %1749 = vmatpush1.msra.mxu0 0.0
        %1750 = vmatprep.mubr.f32.mxu0 0.0
        %1751 = vmatmul.mubr.f32.gmra.mrb[0].mxu0 %v1684
        %v1752 = vpop.f32.mrb[0].mxu0
        %v1753 = vadd.f32 0.0, %v1752
        %v1754 = vpop.f32.mrb[0].mxu0
        %1755 = vdwg.mxu0
        %v1757 = vsel %vm1322, %v1658, 0
        %1759 = vmatprep.subr.mxu0 0.0
        %1760 = vmatpush1.msra.mxu0 %v1319
        %1761 = vmatprep.subr.mxu0 0.0
        %1762 = vmatpush1.msra.mxu0 0.0
        %1763 = vmatprep.subr.mxu0 0.0
        %1764 = vmatpush1.msra.mxu0 0.0
        %1765 = vmatprep.subr.mxu0 0.0
        %1766 = vmatpush1.msra.mxu0 0.0
        %1767 = vmatprep.subr.mxu0 0.0
        %1768 = vmatpush1.msra.mxu0 0.0
        %1769 = vmatprep.subr.mxu0 0.0
        %1770 = vmatpush1.msra.mxu0 0.0
        %1771 = vmatprep.subr.mxu0 0.0
        %1772 = vmatpush1.msra.mxu0 0.0
        %1773 = vmatprep.subr.mxu0 0.0
        %1774 = vmatpush1.msra.mxu0 0.0
        %1775 = vmatprep.subr.mxu0 0.0
        %1776 = vmatpush1.msra.mxu0 0.0
        %1777 = vmatprep.subr.mxu0 0.0
        %1778 = vmatpush1.msra.mxu0 0.0
        %1779 = vmatprep.subr.mxu0 0.0
        %1780 = vmatpush1.msra.mxu0 0.0
        %1781 = vmatprep.subr.mxu0 0.0
        %1782 = vmatpush1.msra.mxu0 0.0
        %1783 = vmatprep.subr.mxu0 0.0
        %1784 = vmatpush1.msra.mxu0 0.0
        %1785 = vmatprep.subr.mxu0 0.0
        %1786 = vmatpush1.msra.mxu0 0.0
        %1787 = vmatprep.subr.mxu0 0.0
        %1788 = vmatpush1.msra.mxu0 0.0
        %1789 = vmatprep.subr.mxu0 0.0
        %1790 = vmatpush1.msra.mxu0 0.0
        %1791 = vmatprep.subr.mxu0 0.0
        %1792 = vmatpush1.msra.mxu0 0.0
        %1793 = vmatprep.subr.mxu0 0.0
        %1794 = vmatpush1.msra.mxu0 0.0
        %1795 = vmatprep.subr.mxu0 0.0
        %1796 = vmatpush1.msra.mxu0 0.0
        %1797 = vmatprep.subr.mxu0 0.0
        %1798 = vmatpush1.msra.mxu0 0.0
        %1799 = vmatprep.subr.mxu0 0.0
        %1800 = vmatpush1.msra.mxu0 0.0
        %1801 = vmatprep.subr.mxu0 0.0
        %1802 = vmatpush1.msra.mxu0 0.0
        %1803 = vmatprep.subr.mxu0 0.0
        %1804 = vmatpush1.msra.mxu0 0.0
        %1805 = vmatprep.subr.mxu0 0.0
        %1806 = vmatpush1.msra.mxu0 0.0
        %1807 = vmatprep.subr.mxu0 0.0
        %1808 = vmatpush1.msra.mxu0 0.0
        %1809 = vmatprep.subr.mxu0 0.0
        %1810 = vmatpush1.msra.mxu0 0.0
        %1811 = vmatprep.subr.mxu0 0.0
        %1812 = vmatpush1.msra.mxu0 0.0
        %1813 = vmatprep.subr.mxu0 0.0
        %1814 = vmatpush1.msra.mxu0 0.0
        %1815 = vmatprep.subr.mxu0 0.0
        %1816 = vmatpush1.msra.mxu0 0.0
        %1817 = vmatprep.subr.mxu0 0.0
        %1818 = vmatpush1.msra.mxu0 0.0
        %1819 = vmatprep.subr.mxu0 0.0
        %1820 = vmatpush1.msra.mxu0 0.0
        %1821 = vmatprep.subr.mxu0 0.0
        %1822 = vmatpush1.msra.mxu0 0.0
        %1823 = vmatprep.mubr.f32.mxu0 0.0
        %1824 = vmatmul.mubr.f32.gmra.mrb[0].mxu0 %v1757
        %v1825 = vpop.f32.mrb[0].mxu0
        %v1826 = vadd.f32 0.0, %v1825
        %v1827 = vpop.f32.mrb[0].mxu0
        %1828 = vdwg.mxu0
        %v1830 = vsel %vm1322, %v1660, 0
        %1832 = vmatprep.subr.mxu0 0.0
        %1833 = vmatpush1.msra.mxu0 %v1320
        %1834 = vmatprep.subr.mxu0 0.0
        %1835 = vmatpush1.msra.mxu0 0.0
        %1836 = vmatprep.subr.mxu0 0.0
        %1837 = vmatpush1.msra.mxu0 0.0
        %1838 = vmatprep.subr.mxu0 0.0
        %1839 = vmatpush1.msra.mxu0 0.0
        %1840 = vmatprep.subr.mxu0 0.0
        %1841 = vmatpush1.msra.mxu0 0.0
        %1842 = vmatprep.subr.mxu0 0.0
        %1843 = vmatpush1.msra.mxu0 0.0
        %1844 = vmatprep.subr.mxu0 0.0
        %1845 = vmatpush1.msra.mxu0 0.0
        %1846 = vmatprep.subr.mxu0 0.0
        %1847 = vmatpush1.msra.mxu0 0.0
        %1848 = vmatprep.subr.mxu0 0.0
        %1849 = vmatpush1.msra.mxu0 0.0
        %1850 = vmatprep.subr.mxu0 0.0
        %1851 = vmatpush1.msra.mxu0 0.0
        %1852 = vmatprep.subr.mxu0 0.0
        %1853 = vmatpush1.msra.mxu0 0.0
        %1854 = vmatprep.subr.mxu0 0.0
        %1855 = vmatpush1.msra.mxu0 0.0
        %1856 = vmatprep.subr.mxu0 0.0
        %1857 = vmatpush1.msra.mxu0 0.0
        %1858 = vmatprep.subr.mxu0 0.0
        %1859 = vmatpush1.msra.mxu0 0.0
        %1860 = vmatprep.subr.mxu0 0.0
        %1861 = vmatpush1.msra.mxu0 0.0
        %1862 = vmatprep.subr.mxu0 0.0
        %1863 = vmatpush1.msra.mxu0 0.0
        %1864 = vmatprep.subr.mxu0 0.0
        %1865 = vmatpush1.msra.mxu0 0.0
        %1866 = vmatprep.subr.mxu0 0.0
        %1867 = vmatpush1.msra.mxu0 0.0
        %1868 = vmatprep.subr.mxu0 0.0
        %1869 = vmatpush1.msra.mxu0 0.0
        %1870 = vmatprep.subr.mxu0 0.0
        %1871 = vmatpush1.msra.mxu0 0.0
        %1872 = vmatprep.subr.mxu0 0.0
        %1873 = vmatpush1.msra.mxu0 0.0
        %1874 = vmatprep.subr.mxu0 0.0
        %1875 = vmatpush1.msra.mxu0 0.0
        %1876 = vmatprep.subr.mxu0 0.0
        %1877 = vmatpush1.msra.mxu0 0.0
        %1878 = vmatprep.subr.mxu0 0.0
        %1879 = vmatpush1.msra.mxu0 0.0
        %1880 = vmatprep.subr.mxu0 0.0
        %1881 = vmatpush1.msra.mxu0 0.0
        %1882 = vmatprep.subr.mxu0 0.0
        %1883 = vmatpush1.msra.mxu0 0.0
        %1884 = vmatprep.subr.mxu0 0.0
        %1885 = vmatpush1.msra.mxu0 0.0
        %1886 = vmatprep.subr.mxu0 0.0
        %1887 = vmatpush1.msra.mxu0 0.0
        %1888 = vmatprep.subr.mxu0 0.0
        %1889 = vmatpush1.msra.mxu0 0.0
        %1890 = vmatprep.subr.mxu0 0.0
        %1891 = vmatpush1.msra.mxu0 0.0
        %1892 = vmatprep.subr.mxu0 0.0
        %1893 = vmatpush1.msra.mxu0 0.0
        %1894 = vmatprep.subr.mxu0 0.0
        %1895 = vmatpush1.msra.mxu0 0.0
        %1896 = vmatprep.mubr.f32.mxu0 0.0
        %1897 = vmatmul.mubr.f32.gmra.mrb[0].mxu0 %v1830
        %v1898 = vpop.f32.mrb[0].mxu0
        %v1899 = vadd.f32 0.0, %v1898
        %v1900 = vpop.f32.mrb[0].mxu0
        %1901 = vdwg.mxu0
        %v1903 = vsel %vm1322, %v1662, 0
        %1905 = vmatprep.subr.mxu0 0.0
        %1906 = vmatpush1.msra.mxu0 %v1321
        %1907 = vmatprep.subr.mxu0 0.0
        %1908 = vmatpush1.msra.mxu0 0.0
        %1909 = vmatprep.subr.mxu0 0.0
        %1910 = vmatpush1.msra.mxu0 0.0
        %1911 = vmatprep.subr.mxu0 0.0
        %1912 = vmatpush1.msra.mxu0 0.0
        %1913 = vmatprep.subr.mxu0 0.0
        %1914 = vmatpush1.msra.mxu0 0.0
        %1915 = vmatprep.subr.mxu0 0.0
        %1916 = vmatpush1.msra.mxu0 0.0
        %1917 = vmatprep.subr.mxu0 0.0
        %1918 = vmatpush1.msra.mxu0 0.0
        %1919 = vmatprep.subr.mxu0 0.0
        %1920 = vmatpush1.msra.mxu0 0.0
        %1921 = vmatprep.subr.mxu0 0.0
        %1922 = vmatpush1.msra.mxu0 0.0
        %1923 = vmatprep.subr.mxu0 0.0
        %1924 = vmatpush1.msra.mxu0 0.0
        %1925 = vmatprep.subr.mxu0 0.0
        %1926 = vmatpush1.msra.mxu0 0.0
        %1927 = vmatprep.subr.mxu0 0.0
        %1928 = vmatpush1.msra.mxu0 0.0
        %1929 = vmatprep.subr.mxu0 0.0
        %1930 = vmatpush1.msra.mxu0 0.0
        %1931 = vmatprep.subr.mxu0 0.0
        %1932 = vmatpush1.msra.mxu0 0.0
        %1933 = vmatprep.subr.mxu0 0.0
        %1934 = vmatpush1.msra.mxu0 0.0
        %1935 = vmatprep.subr.mxu0 0.0
        %1936 = vmatpush1.msra.mxu0 0.0
        %1937 = vmatprep.subr.mxu0 0.0
        %1938 = vmatpush1.msra.mxu0 0.0
        %1939 = vmatprep.subr.mxu0 0.0
        %1940 = vmatpush1.msra.mxu0 0.0
        %1941 = vmatprep.subr.mxu0 0.0
        %1942 = vmatpush1.msra.mxu0 0.0
        %1943 = vmatprep.subr.mxu0 0.0
        %1944 = vmatpush1.msra.mxu0 0.0
        %1945 = vmatprep.subr.mxu0 0.0
        %1946 = vmatpush1.msra.mxu0 0.0
        %1947 = vmatprep.subr.mxu0 0.0
        %1948 = vmatpush1.msra.mxu0 0.0
        %1949 = vmatprep.subr.mxu0 0.0
        %1950 = vmatpush1.msra.mxu0 0.0
        %1951 = vmatprep.subr.mxu0 0.0
        %1952 = vmatpush1.msra.mxu0 0.0
        %1953 = vmatprep.subr.mxu0 0.0
        %1954 = vmatpush1.msra.mxu0 0.0
        %1955 = vmatprep.subr.mxu0 0.0
        %1956 = vmatpush1.msra.mxu0 0.0
        %1957 = vmatprep.subr.mxu0 0.0
        %1958 = vmatpush1.msra.mxu0 0.0
        %1959 = vmatprep.subr.mxu0 0.0
        %1960 = vmatpush1.msra.mxu0 0.0
        %1961 = vmatprep.subr.mxu0 0.0
        %1962 = vmatpush1.msra.mxu0 0.0
        %1963 = vmatprep.subr.mxu0 0.0
        %1964 = vmatpush1.msra.mxu0 0.0
        %1965 = vmatprep.subr.mxu0 0.0
        %1966 = vmatpush1.msra.mxu0 0.0
        %1967 = vmatprep.subr.mxu0 0.0
        %1968 = vmatpush1.msra.mxu0 0.0
        %1969 = vmatprep.mubr.f32.mxu0 0.0
        %1970 = vmatmul.mubr.f32.gmra.mrb[0].mxu0 %v1903
        %v1971 = vpop.f32.mrb[0].mxu0
        %v1972 = vadd.f32 0.0, %v1971
        %v1973 = vpop.f32.mrb[0].mxu0
        %1974 = vdwg.mxu0
        %v1975 = vadd.f32 %v1663, %v1753
        %v1976 = vadd.f32 %v1664, %v1826
        %v1977 = vadd.f32 %v1665, %v1899
        %v1978 = vadd.f32 %v1666, %v1972
        %v1979 = vrcp.pop %v1679
        %v1980 = vrcp.pop %v1680
        %v1981 = vrcp.pop %v1681
        %v1982 = vrcp.pop %v1682
        %v1983 = vmul.f32 %v1975, %v1979
        %v1984 = vmul.f32 %v1976, %v1980
        %v1985 = vmul.f32 %v1977, %v1981
        %v1986 = vmul.f32 %v1978, %v1982
        %v1987 = vcombine.low %v1983, %v1985
        %v1988 = vcombine.high %v1983, %v1985
        %v1990 = vunpack.c.l.s4 1983009808
        %v1991 = vunpack.c.0.s8 %v1990
        %v1992 = vlaneseq
        %v1993 = vshrl.u32 %v1992, 7
        %v1994 = vsub.s32 %v1991, %v1993
        %v1995 = vrot.slane %v1987, %v1994
        %v1997 = vunpack.c.l.s4 1983009808
        %v1998 = vunpack.c.0.s8 %v1997
        %v1999 = vlaneseq
        %v2000 = vshrl.u32 %v1999, 7
        %v2001 = vsub.s32 %v1998, %v2000
        %v2002 = vrot.slane %v1988, %v2001
        %v2003 = vcombine.low %v1984, %v1986
        %v2004 = vcombine.high %v1984, %v1986
        %v2006 = vunpack.c.l.s4 1983009808
        %v2007 = vunpack.c.0.s8 %v2006
        %v2008 = vlaneseq
        %v2009 = vshrl.u32 %v2008, 7
        %v2010 = vsub.s32 %v2007, %v2009
        %v2011 = vrot.slane %v2003, %v2010
        %v2013 = vunpack.c.l.s4 1983009808
        %v2014 = vunpack.c.0.s8 %v2013
        %v2015 = vlaneseq
        %v2016 = vshrl.u32 %v2015, 7
        %v2017 = vsub.s32 %v2014, %v2016
        %v2018 = vrot.slane %v2004, %v2017
        %v2019 = vcombine.low %v1995, %v2011
        %v2020 = vcombine.high %v1995, %v2011
        %v2022 = vunpack.c.l.s4 1934713408
        %v2023 = vunpack.c.0.s8 %v2022
        %v2024 = vlaneseq
        %v2025 = vshrl.u32 %v2024, 7
        %v2026 = vsub.s32 %v2023, %v2025
        %v2027 = vrot.slane %v2019, %v2026
        %v2029 = vunpack.c.l.s4 1934713408
        %v2030 = vunpack.c.0.s8 %v2029
        %v2031 = vlaneseq
        %v2032 = vshrl.u32 %v2031, 7
        %v2033 = vsub.s32 %v2030, %v2032
        %v2034 = vrot.slane %v2020, %v2033
        %v2035 = vcombine.low %v2002, %v2018
        %v2036 = vcombine.high %v2002, %v2018
        %v2038 = vunpack.c.l.s4 1934713408
        %v2039 = vunpack.c.0.s8 %v2038
        %v2040 = vlaneseq
        %v2041 = vshrl.u32 %v2040, 7
        %v2042 = vsub.s32 %v2039, %v2041
        %v2043 = vrot.slane %v2035, %v2042
        %v2045 = vunpack.c.l.s4 1934713408
        %v2046 = vunpack.c.0.s8 %v2045
        %v2047 = vlaneseq
        %v2048 = vshrl.u32 %v2047, 7
        %v2049 = vsub.s32 %v2046, %v2048
        %v2050 = vrot.slane %v2036, %v2049
        %v2051 = vcombine.high %v2027, 0.0
        %v2052 = vcombine.high %v2034, 0.0
        %v2053 = vcombine.high %v2043, 0.0
        %v2054 = vcombine.high %v2050, 0.0
        %v2055 = vcombine.low %v2027, %v2034
        %v2057 = vunpack.c.l.s4 1983009808
        %v2058 = vunpack.c.0.s8 %v2057
        %v2059 = vlaneseq
        %v2060 = vshrl.u32 %v2059, 7
        %v2061 = vsub.s32 %v2058, %v2060
        %v2062 = vrot.slane %v2055, %v2061
        %v2063 = vcombine.low %v2051, %v2052
        %v2065 = vunpack.c.l.s4 1983009808
        %v2066 = vunpack.c.0.s8 %v2065
        %v2067 = vlaneseq
        %v2068 = vshrl.u32 %v2067, 7
        %v2069 = vsub.s32 %v2066, %v2068
        %v2070 = vrot.slane %v2063, %v2069
        %v2071 = vcombine.low %v2043, %v2050
        %v2073 = vunpack.c.l.s4 1983009808
        %v2074 = vunpack.c.0.s8 %v2073
        %v2075 = vlaneseq
        %v2076 = vshrl.u32 %v2075, 7
        %v2077 = vsub.s32 %v2074, %v2076
        %v2078 = vrot.slane %v2071, %v2077
        %v2079 = vcombine.low %v2053, %v2054
        %v2081 = vunpack.c.l.s4 1983009808
        %v2082 = vunpack.c.0.s8 %v2081
        %v2083 = vlaneseq
        %v2084 = vshrl.u32 %v2083, 7
        %v2085 = vsub.s32 %v2082, %v2084
        %v2086 = vrot.slane %v2079, %v2085
        %v2087 = vcombine.low %v2062, %v2070
        %v2088 = vcombine.high %v2062, %v2070
        %v2090 = vunpack.c.l.s4 1934713408
        %v2091 = vunpack.c.0.s8 %v2090
        %v2092 = vlaneseq
        %v2093 = vshrl.u32 %v2092, 7
        %v2094 = vsub.s32 %v2091, %v2093
        %v2095 = vrot.slane %v2087, %v2094
        %v2097 = vunpack.c.l.s4 1934713408
        %v2098 = vunpack.c.0.s8 %v2097
        %v2099 = vlaneseq
        %v2100 = vshrl.u32 %v2099, 7
        %v2101 = vsub.s32 %v2098, %v2100
        %v2102 = vrot.slane %v2088, %v2101
        %v2103 = vcombine.low %v2078, %v2086
        %v2104 = vcombine.high %v2078, %v2086
        %v2106 = vunpack.c.l.s4 1934713408
        %v2107 = vunpack.c.0.s8 %v2106
        %v2108 = vlaneseq
        %v2109 = vshrl.u32 %v2108, 7
        %v2110 = vsub.s32 %v2107, %v2109
        %v2111 = vrot.slane %v2103, %v2110
        %v2113 = vunpack.c.l.s4 1934713408
        %v2114 = vunpack.c.0.s8 %v2113
        %v2115 = vlaneseq
        %v2116 = vshrl.u32 %v2115, 7
        %v2117 = vsub.s32 %v2114, %v2116
        %v2118 = vrot.slane %v2104, %v2117
        %v2119 = vcombine.low %v2095, %v2111
        %v2120 = vcombine.high %v2095, %v2111
        %v2121 = vcombine.low %v2102, %v2118
        %v2122 = vcombine.high %v2102, %v2118
        %2124 = vrot.lane.b32.xlu0 %v2120, 8
        %v2125 = vpop.permute.xlu0 %2124
        %2128 = vrot.lane.b32.xlu0 %v2121, 16
        %v2129 = vpop.permute.xlu0 %2128
        %2132 = vrot.lane.b32.xlu0 %v2122, 24
        %v2133 = vpop.permute.xlu0 %2132
        %v2135 = vsel %vm1322, %v2119, %v2125
        %vm2136 = vcmask 130048
        %v2137 = vsel %vm2136, %v2135, %v2129
        %vm2138 = vcmask 195584
        %v2139 = vsel %vm2138, %v2137, %v2133
        %v2140 = vld [vmem:[#allocation7] sm:$0xff]
        %v2141 = vld [vmem:[#allocation7 + $0x8] sm:$0xff]
        %v2142 = vld [vmem:[#allocation7 + $0x10] sm:$0xff]
        %v2143 = vld [vmem:[#allocation7 + $0x18] sm:$0xff]
        %v2144 = vld [vmem:[%s8] sm:$0x1]
        %v2146 = vlaneseq
        %v2147 = vshrl.u32 %v2146, 7
        %v2148 = vsub.s32 0, %v2147
        %v2149 = vrot.slane %v2144, %v2148
        %v2152 = vsel %vm1093, %v2139, 0
        %2154 = vmatprep.subr.mxu0 0.0
        %2155 = vmatpush1.msra.mxu0 %v2140
        %2156 = vmatprep.subr.mxu0 0.0
        %2157 = vmatpush1.msra.mxu0 %v2141
        %2158 = vmatprep.subr.mxu0 0.0
        %2159 = vmatpush1.msra.mxu0 %v2142
        %2160 = vmatprep.subr.mxu0 0.0
        %2161 = vmatpush1.msra.mxu0 %v2143
        %2162 = vmatprep.subr.mxu0 0.0
        %2163 = vmatpush1.msra.mxu0 0.0
        %2164 = vmatprep.subr.mxu0 0.0
        %2165 = vmatpush1.msra.mxu0 0.0
        %2166 = vmatprep.subr.mxu0 0.0
        %2167 = vmatpush1.msra.mxu0 0.0
        %2168 = vmatprep.subr.mxu0 0.0
        %2169 = vmatpush1.msra.mxu0 0.0
        %2170 = vmatprep.subr.mxu0 0.0
        %2171 = vmatpush1.msra.mxu0 0.0
        %2172 = vmatprep.subr.mxu0 0.0
        %2173 = vmatpush1.msra.mxu0 0.0
        %2174 = vmatprep.subr.mxu0 0.0
        %2175 = vmatpush1.msra.mxu0 0.0
        %2176 = vmatprep.subr.mxu0 0.0
        %2177 = vmatpush1.msra.mxu0 0.0
        %2178 = vmatprep.subr.mxu0 0.0
        %2179 = vmatpush1.msra.mxu0 0.0
        %2180 = vmatprep.subr.mxu0 0.0
        %2181 = vmatpush1.msra.mxu0 0.0
        %2182 = vmatprep.subr.mxu0 0.0
        %2183 = vmatpush1.msra.mxu0 0.0
        %2184 = vmatprep.subr.mxu0 0.0
        %2185 = vmatpush1.msra.mxu0 0.0
        %2186 = vmatprep.subr.mxu0 0.0
        %2187 = vmatpush1.msra.mxu0 0.0
        %2188 = vmatprep.subr.mxu0 0.0
        %2189 = vmatpush1.msra.mxu0 0.0
        %2190 = vmatprep.subr.mxu0 0.0
        %2191 = vmatpush1.msra.mxu0 0.0
        %2192 = vmatprep.subr.mxu0 0.0
        %2193 = vmatpush1.msra.mxu0 0.0
        %2194 = vmatprep.subr.mxu0 0.0
        %2195 = vmatpush1.msra.mxu0 0.0
        %2196 = vmatprep.subr.mxu0 0.0
        %2197 = vmatpush1.msra.mxu0 0.0
        %2198 = vmatprep.subr.mxu0 0.0
        %2199 = vmatpush1.msra.mxu0 0.0
        %2200 = vmatprep.subr.mxu0 0.0
        %2201 = vmatpush1.msra.mxu0 0.0
        %2202 = vmatprep.subr.mxu0 0.0
        %2203 = vmatpush1.msra.mxu0 0.0
        %2204 = vmatprep.subr.mxu0 0.0
        %2205 = vmatpush1.msra.mxu0 0.0
        %2206 = vmatprep.subr.mxu0 0.0
        %2207 = vmatpush1.msra.mxu0 0.0
        %2208 = vmatprep.subr.mxu0 0.0
        %2209 = vmatpush1.msra.mxu0 0.0
        %2210 = vmatprep.subr.mxu0 0.0
        %2211 = vmatpush1.msra.mxu0 0.0
        %2212 = vmatprep.subr.mxu0 0.0
        %2213 = vmatpush1.msra.mxu0 0.0
        %2214 = vmatprep.subr.mxu0 0.0
        %2215 = vmatpush1.msra.mxu0 0.0
        %2216 = vmatprep.subr.mxu0 0.0
        %2217 = vmatpush1.msra.mxu0 0.0
        %2218 = vmatprep.mubr.f32.mxu0 0.0
        %2219 = vmatmul.mubr.f32.gmra.mrb[0].mxu0 %v2152
        %v2220 = vpop.f32.mrb[0].mxu0
        %v2221 = vadd.f32 %v2149, %v2220
        %v2222 = vpop.f32.mrb[0].mxu0
        %2223 = vdwg.mxu0
        %v2224 = vadd.f32 %v1081, %v2221
        %v2225 = vsel %vm1093, %v2224, 0.0
        %2226 = vadd.xlane.f32.xlu0 %v2225
        %v2227 = vpop.xlane.xlu0 %2226
        %v2228 = vrcp.pop 32.0
        %v2229 = vmul.f32 %v2227, %v2228
        %v2230 = vsub.f32 %v2224, %v2229
        %v2231 = vmul.f32 %v2230, %v2230
        %v2232 = vsel %vm1093, %v2231, 0.0
        %2233 = vadd.xlane.f32.xlu0 %v2232
        %v2234 = vpop.xlane.xlu0 %2233
        %v2235 = vmul.f32 %v2234, %v2228
        %v2236 = vadd.f32 %v2235, 1e-05
        %v2237 = vrsqrt.pop %v2236
        %v2238 = vmul.f32 %v2230, %v2237
        %v2239 = vld [vmem:[%s13] sm:$0x1]
        %v2241 = vlaneseq
        %v2242 = vshrl.u32 %v2241, 7
        %v2243 = vsub.s32 0, %v2242
        %v2244 = vrot.slane %v2239, %v2243
        %v2246 = vmul.f32 %v2238, %v2244
        %v2247 = vld [vmem:[%s14] sm:$0x1]
        %v2249 = vlaneseq
        %v2250 = vshrl.u32 %v2249, 7
        %v2251 = vsub.s32 0, %v2250
        %v2252 = vrot.slane %v2247, %v2251
        %v2254 = vadd.f32 %v2246, %v2252
        %v2255 = vld [vmem:[#allocation9] sm:$0xff]
        %v2256 = vld [vmem:[#allocation9 + $0x8] sm:$0xff]
        %v2257 = vld [vmem:[#allocation9 + $0x10] sm:$0xff]
        %v2258 = vld [vmem:[#allocation9 + $0x18] sm:$0xff]
        %v2259 = vld [vmem:[%s10] sm:$0x1]
        %v2261 = vlaneseq
        %v2262 = vshrl.u32 %v2261, 7
        %v2263 = vsub.s32 0, %v2262
        %v2264 = vrot.slane %v2259, %v2263
        %v2267 = vsel %vm1093, %v2254, 0
        %2269 = vmatprep.subr.mxu0 0.0
        %2270 = vmatpush1.msra.mxu0 %v2255
        %2271 = vmatprep.subr.mxu0 0.0
        %2272 = vmatpush1.msra.mxu0 %v2256
        %2273 = vmatprep.subr.mxu0 0.0
        %2274 = vmatpush1.msra.mxu0 %v2257
        %2275 = vmatprep.subr.mxu0 0.0
        %2276 = vmatpush1.msra.mxu0 %v2258
        %2277 = vmatprep.subr.mxu0 0.0
        %2278 = vmatpush1.msra.mxu0 0.0
        %2279 = vmatprep.subr.mxu0 0.0
        %2280 = vmatpush1.msra.mxu0 0.0
        %2281 = vmatprep.subr.mxu0 0.0
        %2282 = vmatpush1.msra.mxu0 0.0
        %2283 = vmatprep.subr.mxu0 0.0
        %2284 = vmatpush1.msra.mxu0 0.0
        %2285 = vmatprep.subr.mxu0 0.0
        %2286 = vmatpush1.msra.mxu0 0.0
        %2287 = vmatprep.subr.mxu0 0.0
        %2288 = vmatpush1.msra.mxu0 0.0
        %2289 = vmatprep.subr.mxu0 0.0
        %2290 = vmatpush1.msra.mxu0 0.0
        %2291 = vmatprep.subr.mxu0 0.0
        %2292 = vmatpush1.msra.mxu0 0.0
        %2293 = vmatprep.subr.mxu0 0.0
        %2294 = vmatpush1.msra.mxu0 0.0
        %2295 = vmatprep.subr.mxu0 0.0
        %2296 = vmatpush1.msra.mxu0 0.0
        %2297 = vmatprep.subr.mxu0 0.0
        %2298 = vmatpush1.msra.mxu0 0.0
        %2299 = vmatprep.subr.mxu0 0.0
        %2300 = vmatpush1.msra.mxu0 0.0
        %2301 = vmatprep.subr.mxu0 0.0
        %2302 = vmatpush1.msra.mxu0 0.0
        %2303 = vmatprep.subr.mxu0 0.0
        %2304 = vmatpush1.msra.mxu0 0.0
        %2305 = vmatprep.subr.mxu0 0.0
        %2306 = vmatpush1.msra.mxu0 0.0
        %2307 = vmatprep.subr.mxu0 0.0
        %2308 = vmatpush1.msra.mxu0 0.0
        %2309 = vmatprep.subr.mxu0 0.0
        %2310 = vmatpush1.msra.mxu0 0.0
        %2311 = vmatprep.subr.mxu0 0.0
        %2312 = vmatpush1.msra.mxu0 0.0
        %2313 = vmatprep.subr.mxu0 0.0
        %2314 = vmatpush1.msra.mxu0 0.0
        %2315 = vmatprep.subr.mxu0 0.0
        %2316 = vmatpush1.msra.mxu0 0.0
        %2317 = vmatprep.subr.mxu0 0.0
        %2318 = vmatpush1.msra.mxu0 0.0
        %2319 = vmatprep.subr.mxu0 0.0
        %2320 = vmatpush1.msra.mxu0 0.0
        %2321 = vmatprep.subr.mxu0 0.0
        %2322 = vmatpush1.msra.mxu0 0.0
        %2323 = vmatprep.subr.mxu0 0.0
        %2324 = vmatpush1.msra.mxu0 0.0
        %2325 = vmatprep.subr.mxu0 0.0
        %2326 = vmatpush1.msra.mxu0 0.0
        %2327 = vmatprep.subr.mxu0 0.0
        %2328 = vmatpush1.msra.mxu0 0.0
        %2329 = vmatprep.subr.mxu0 0.0
        %2330 = vmatpush1.msra.mxu0 0.0
        %2331 = vmatprep.subr.mxu0 0.0
        %2332 = vmatpush1.msra.mxu0 0.0
        %2333 = vmatprep.mubr.f32.mxu0 0.0
        %2334 = vmatmul.mubr.f32.gmra.mrb[0].mxu0 %v2267
        %v2335 = vpop.f32.mrb[0].mxu0
        %v2336 = vadd.f32 %v2264, %v2335
        %v2337 = vpop.f32.mrb[0].mxu0
        %2338 = vdwg.mxu0
        %v2339 = vmax.f32 %v2336, 0.0
        %v2340 = vld [vmem:[%s11] sm:$0xff]
        %v2341 = vld [vmem:[%s11 + $0x8] sm:$0xff]
        %v2342 = vld [vmem:[%s11 + $0x10] sm:$0xff]
        %v2343 = vld [vmem:[%s11 + $0x18] sm:$0xff]
        %v2344 = vld [vmem:[%s11 + $0x20] sm:$0xff]
        %v2345 = vld [vmem:[%s11 + $0x28] sm:$0xff]
        %v2346 = vld [vmem:[%s11 + $0x30] sm:$0xff]
        %v2347 = vld [vmem:[%s11 + $0x38] sm:$0xff]
        %v2348 = vld [vmem:[%s12] sm:$0x1]
        %v2350 = vlaneseq
        %v2351 = vshrl.u32 %v2350, 7
        %v2352 = vsub.s32 0, %v2351
        %v2353 = vrot.slane %v2348, %v2352
        %vm2355 = vcmask 523264
        %v2357 = vsel %vm2355, %v2339, 0
        %2359 = vmatprep.subr.mxu0 0.0
        %2360 = vmatpush1.msra.mxu0 %v2340
        %2361 = vmatprep.subr.mxu0 0.0
        %2362 = vmatpush1.msra.mxu0 %v2341
        %2363 = vmatprep.subr.mxu0 0.0
        %2364 = vmatpush1.msra.mxu0 %v2342
        %2365 = vmatprep.subr.mxu0 0.0
        %2366 = vmatpush1.msra.mxu0 %v2343
        %2367 = vmatprep.subr.mxu0 0.0
        %2368 = vmatpush1.msra.mxu0 %v2344
        %2369 = vmatprep.subr.mxu0 0.0
        %2370 = vmatpush1.msra.mxu0 %v2345
        %2371 = vmatprep.subr.mxu0 0.0
        %2372 = vmatpush1.msra.mxu0 %v2346
        %2373 = vmatprep.subr.mxu0 0.0
        %2374 = vmatpush1.msra.mxu0 %v2347
        %2375 = vmatprep.subr.mxu0 0.0
        %2376 = vmatpush1.msra.mxu0 0.0
        %2377 = vmatprep.subr.mxu0 0.0
        %2378 = vmatpush1.msra.mxu0 0.0
        %2379 = vmatprep.subr.mxu0 0.0
        %2380 = vmatpush1.msra.mxu0 0.0
        %2381 = vmatprep.subr.mxu0 0.0
        %2382 = vmatpush1.msra.mxu0 0.0
        %2383 = vmatprep.subr.mxu0 0.0
        %2384 = vmatpush1.msra.mxu0 0.0
        %2385 = vmatprep.subr.mxu0 0.0
        %2386 = vmatpush1.msra.mxu0 0.0
        %2387 = vmatprep.subr.mxu0 0.0
        %2388 = vmatpush1.msra.mxu0 0.0
        %2389 = vmatprep.subr.mxu0 0.0
        %2390 = vmatpush1.msra.mxu0 0.0
        %2391 = vmatprep.subr.mxu0 0.0
        %2392 = vmatpush1.msra.mxu0 0.0
        %2393 = vmatprep.subr.mxu0 0.0
        %2394 = vmatpush1.msra.mxu0 0.0
        %2395 = vmatprep.subr.mxu0 0.0
        %2396 = vmatpush1.msra.mxu0 0.0
        %2397 = vmatprep.subr.mxu0 0.0
        %2398 = vmatpush1.msra.mxu0 0.0
        %2399 = vmatprep.subr.mxu0 0.0
        %2400 = vmatpush1.msra.mxu0 0.0
        %2401 = vmatprep.subr.mxu0 0.0
        %2402 = vmatpush1.msra.mxu0 0.0
        %2403 = vmatprep.subr.mxu0 0.0
        %2404 = vmatpush1.msra.mxu0 0.0
        %2405 = vmatprep.subr.mxu0 0.0
        %2406 = vmatpush1.msra.mxu0 0.0
        %2407 = vmatprep.subr.mxu0 0.0
        %2408 = vmatpush1.msra.mxu0 0.0
        %2409 = vmatprep.subr.mxu0 0.0
        %2410 = vmatpush1.msra.mxu0 0.0
        %2411 = vmatprep.subr.mxu0 0.0
        %2412 = vmatpush1.msra.mxu0 0.0
        %2413 = vmatprep.subr.mxu0 0.0
        %2414 = vmatpush1.msra.mxu0 0.0
        %2415 = vmatprep.subr.mxu0 0.0
        %2416 = vmatpush1.msra.mxu0 0.0
        %2417 = vmatprep.subr.mxu0 0.0
        %2418 = vmatpush1.msra.mxu0 0.0
        %2419 = vmatprep.subr.mxu0 0.0
        %2420 = vmatpush1.msra.mxu0 0.0
        %2421 = vmatprep.subr.mxu0 0.0
        %2422 = vmatpush1.msra.mxu0 0.0
        %2423 = vmatprep.mubr.f32.mxu0 0.0
        %2424 = vmatmul.mubr.f32.gmra.mrb[0].mxu0 %v2357
        %v2425 = vpop.f32.mrb[0].mxu0
        %v2426 = vadd.f32 %v2353, %v2425
        %v2427 = vpop.f32.mrb[0].mxu0
        %2428 = vdwg.mxu0
        %v2429 = vadd.f32 %v2254, %v2426
        %v2430 = vsel %vm1093, %v2429, 0.0
        %2431 = vadd.xlane.f32.xlu0 %v2430
        %v2432 = vpop.xlane.xlu0 %2431
        %v2433 = vmul.f32 %v2432, %v2228
        %v2434 = vsub.f32 %v2429, %v2433
        %v2435 = vmul.f32 %v2434, %v2434
        %v2436 = vsel %vm1093, %v2435, 0.0
        %2437 = vadd.xlane.f32.xlu0 %v2436
        %v2438 = vpop.xlane.xlu0 %2437
        %v2439 = vmul.f32 %v2438, %v2228
        %v2440 = vadd.f32 %v2439, 1e-05
        %v2441 = vrsqrt.pop %v2440
        %v2442 = vmul.f32 %v2434, %v2441
        %v2443 = vld [vmem:[%s15] sm:$0x1]
        %v2445 = vlaneseq
        %v2446 = vshrl.u32 %v2445, 7
        %v2447 = vsub.s32 0, %v2446
        %v2448 = vrot.slane %v2443, %v2447
        %v2450 = vmul.f32 %v2442, %v2448
        %v2451 = vld [vmem:[%s16] sm:$0x1]
        %v2453 = vlaneseq
        %v2454 = vshrl.u32 %v2453, 7
        %v2455 = vsub.s32 0, %v2454
        %v2456 = vrot.slane %v2451, %v2455
        %v2458 = vadd.f32 %v2450, %v2456
        %2459 = vst.msk [vmem:[%s606] sm:$0xff] %vm1093, %v2458
        %s2460 = sand.u32 %s419, 1
        %s2461 = scalar_lea.sflag [#allocation6], %s2460
        %s2462 = sand.u32 %s419, 1
        %s2463 = smul.addr %s2462, 8
        %s2464 = scalar_lea.vmem [#allocation10], %s2463
        // Predicated region
        $region105: #{tpu_custom_call.1} parent=87 // pred_check
          %p2465 = pneg %p429
        $region106: #{tpu_custom_call.1} parent=87 // pred_check_branch
          %2467 = sbr.rel (%p2465) target = $region108
        $region107: #{tpu_custom_call.1} parent=87 // pred_region
          %s2469 = ssub.s32 128, 128
          %2470 = vsyncadd %s2461, %s2469
          %s2471 = sadd.s32 %s40, %s39
          %s2472 = smul.addr %s2471, 128
          %s2473 = scalar_lea.hbm %s17, %s2472
          %s2475 = sshll.u32 %s2464, 4
          %s2476 = int_to_ptr.vmem [resolvable:$true] %s2475
          %2478 = dma.vmem_to_hbm [thread:$0]  %s2476, 128, %s2473, %s2461
        $region108: #{tpu_custom_call.1} parent=87 // pred_fallthru
          _
      $region88: #{tpu_custom_call.1} parent=5 // pred_fallthru
        _
      %p2479 = scmp.le.s32.totalorder 2, %s30
      // Predicated region
      $region109: #{tpu_custom_call.1} parent=5 // pred_check
        %p2480 = pneg %p2479
      $region110: #{tpu_custom_call.1} parent=5 // pred_check_branch
        %2482 = sbr.rel (%p2480) target = $region112
      $region111: #{tpu_custom_call.1} parent=5 // pred_region
        %s2483 = ssub.s32 %s30, 2
        // Predicated region
        $region113: #{tpu_custom_call.1} parent=111 // pred_check
          %p2484 = pneg %p435
        $region114: #{tpu_custom_call.1} parent=111 // pred_check_branch
          %2486 = sbr.rel (%p2484) target = $region116
        $region115: #{tpu_custom_call.1} parent=111 // pred_region
          %s2487 = sand.u32 %s420, 1
          %s2488 = scalar_lea.sflag [#allocation6], %s2487
          %s2489 = sand.u32 %s420, 1
          %s2490 = smul.addr %s2489, 8
          %s2491 = scalar_lea.vmem [#allocation10], %s2490
          %2492 = dma.done %s2488, 128
        $region116: #{tpu_custom_call.1} parent=111 // pred_fallthru
          _
      $region112: #{tpu_custom_call.1} parent=5 // pred_fallthru
        _
    $region6: #{tpu_custom_call.1} parent=1 // loop_footer
      %s34 = sadd.s32 1, %s30
    $region7: #{tpu_custom_call.1} parent=1 // loop_footer_branch
      %29 = sbr.rel target = $region3
    $region8: #{tpu_custom_call.1} parent=1 // loop_exit
      _
    %2493 = vsyncpa [#allocation5], 1
    %s2494 = scalar_lea.sflag [#allocation5], 1
    %2495 = vsyncpa %s2494, 1
    %2496 = vsyncpa [#allocation8], 1
    %2497 = vsyncpa [#allocation6], 1
    %s2498 = scalar_lea.sflag [#allocation6], 1
    %2499 = vsyncpa %s2498, 1

</llo_original>
